<compile_context>
chip_gen: v6e
topology: v6e:2x2x1
jax: 0.10.0
libtpu: 0.0.40
codegen_flags: <defaults>
</compile_context>

<pallas_src>
import functools

import jax
import jax.numpy as jnp
import numpy as np
from jax import lax
from jax.experimental import pallas as pl
from jax.experimental.pallas import tpu as pltpu

K = 5
PAD = K // 2          # 2
BN_EPS = 1e-5
LANE = 128
HALO = 8              # slab halo per side (>= 3*PAD for the 3 stacked convs, sublane-aligned)
T_TILE_MAX = 512      # output rows per grid step (multiple of 16)


def _round_up(n, m):
    return (n + m - 1) // m * m


# ----------------------------- Pallas kernel ------------------------------- #

def _encoder_pre_kernel(x_hbm,
                        w1_ref, s1_ref, b1_ref,
                        w2_ref, s2_ref, b2_ref,
                        w3_ref, s3_ref, b3_ref,
                        lw_ref, lb_ref,
                        out_ref,
                        xbuf, sem,
                        *, tt, t_true):
    b = pl.program_id(0)
    t = pl.program_id(1)
    nt = pl.num_programs(1)
    slab = tt + 2 * HALO
    slot = t % 2

    def slab_copy(bi, ti, s):
        # x is host zero-padded (HALO rows each side + channels to 128 lanes), so this
        # window is always in-bounds.
        return pltpu.make_async_copy(
            x_hbm.at[bi, pl.ds(ti * tt, slab), :], xbuf.at[s], sem.at[s])

    # Prime the pipeline at the first time tile of each batch row (also correct when the
    # batch axis is sharded across TensorCores: the chain restarts at every t == 0).
    @pl.when(t == 0)
    def _():
        slab_copy(b, t, slot).start()

    # Wait for this tile's slab (prefetched at the previous step, except at t == 0).
    slab_copy(b, t, slot).wait()

    # Prefetch the next time tile of the same batch row into the other slot.
    @pl.when(t + 1 < nt)
    def _():
        slab_copy(b, t + 1, 1 - slot).start()

    xs = xbuf.at[slot]                        # (slab, 128) bf16 view
    n1, n2, n3 = tt + 4 * PAD, tt + 2 * PAD, tt

    # Hoisted sequence-edge validity column: layer-1 output row j has absolute time
    # t*tt + j - 2*PAD.  Rows outside [0, T) are zeroed so they act as the next conv's
    # zero padding (matches PyTorch per-layer 'same' padding); layer 3 needs no mask
    # because its rows land exactly on this tile's output times.
    rows = lax.broadcasted_iota(jnp.int32, (n1, 1), 0)
    t_abs = rows + (t * tt - 2 * PAD)
    valid1 = (t_abs >= 0) & (t_abs < t_true)          # (n1, 1) -> layer-1 rows
    valid2 = valid1[PAD:PAD + n2]                     # layer-2 rows

    def conv_bn_relu(slices, w_ref, scale_ref, shift_ref, valid):
        # K=5 taps fused into ONE deep (5*128) MXU contraction; operand built in bf16,
        # f32 accumulation; conv bias + eval-mode BN folded into a per-channel affine.
        hc = jnp.concatenate(slices, axis=1)
        acc = jnp.dot(hc, w_ref[...], preferred_element_type=jnp.float32)
        y = jnp.maximum(acc * scale_ref[...] + shift_ref[...], 0.0)
        return jnp.where(valid, y, 0.0) if valid is not None else y

    h1 = conv_bn_relu([xs[PAD + k:PAD + k + n1, :] for k in range(K)],
                      w1_ref, s1_ref, b1_ref, valid1)         # (tt+8, 128) f32
    h1b = h1.astype(jnp.bfloat16)
    h2 = conv_bn_relu([h1b[k:k + n2, :] for k in range(K)],
                      w2_ref, s2_ref, b2_ref, valid2)         # (tt+4, 128) f32
    h2b = h2.astype(jnp.bfloat16)
    h3 = conv_bn_relu([h2b[k:k + n3, :] for k in range(K)],
                      w3_ref, s3_ref, b3_ref, None)           # (tt, 128) f32
    # TODO(synk): F.dropout(p=0.1, training=True) and training-mode BatchNorm batch
    # statistics are stochastic / batch-dependent; this kernel implements eval() semantics.
    y = jnp.dot(h3.astype(jnp.bfloat16), lw_ref[...],
                preferred_element_type=jnp.float32) + lb_ref[...]
    out_ref[0] = jnp.maximum(y, 0.0)                          # lane-dense f32 store


# ------------------------------ host wrapper -------------------------------- #

def encoder_pre(x, params, *, t_tile_max=T_TILE_MAX):
    """x: (B, T, in_channels) float32 -> (B, T, emb_channels) float32 (eval-mode)."""
    B, T, Cin = x.shape
    Cemb = params["lin_w"].shape[0]
    cin_p = _round_up(Cin, LANE)
    cemb_p = _round_up(Cemb, LANE)

    tt = _round_up(min(t_tile_max, _round_up(T, 16)), 16)   # multiple of 16
    nt = pl.cdiv(T, tt)
    lt = nt * tt + 2 * HALO
    slab = tt + 2 * HALO

    # Host zero-pad: time padding supplies the sequence-edge zeros (so every slab DMA is
    # in-bounds), channels are zero-padded to the 128-lane width; bf16 halves x HBM bytes.
    # TODO(synk): fold this pad / layout pass into the upstream producer of x.
    xp = jnp.zeros((B, lt, cin_p), jnp.bfloat16)
    xp = xp.at[:, HALO:HALO + T, :Cin].set(x.astype(jnp.bfloat16))

    def fold(layer, cin_pad):
        w, bias, gamma, beta, mean, var = layer
        cout, cin, _ = w.shape
        scale = gamma / jnp.sqrt(var + BN_EPS)
        shift = beta - mean * scale + bias * scale
        wk = jnp.transpose(w, (2, 1, 0)).astype(jnp.float32)            # (K, Cin, Cout)
        wkp = jnp.zeros((K, cin_pad, cemb_p), jnp.float32)
        wkp = wkp.at[:, :cin, :cout].set(wk)
        wkp = wkp.reshape(K * cin_pad, cemb_p).astype(jnp.bfloat16)     # fused contraction
        sc = jnp.zeros((1, cemb_p), jnp.float32).at[0, :cout].set(scale)
        sh = jnp.zeros((1, cemb_p), jnp.float32).at[0, :cout].set(shift)
        return wkp, sc, sh

    w1, s1, b1 = fold(params["convs"][0], cin_p)
    w2, s2, b2 = fold(params["convs"][1], cemb_p)
    w3, s3, b3 = fold(params["convs"][2], cemb_p)

    lw = jnp.zeros((cemb_p, cemb_p), jnp.float32)
    lw = lw.at[:Cemb, :Cemb].set(jnp.transpose(params["lin_w"])).astype(jnp.bfloat16)
    lb = jnp.zeros((1, cemb_p), jnp.float32).at[0, :Cemb].set(params["lin_b"])

    const2 = lambda b, t: (0, 0)   # weights/affines: constant index -> fetched once, resident
    in_specs = [pl.BlockSpec(memory_space=pl.ANY)]   # x stays in HBM; streamed manually
    in_specs += [pl.BlockSpec(a.shape, const2)
                 for a in (w1, s1, b1, w2, s2, b2, w3, s3, b3, lw, lb)]

    out = pl.pallas_call(
        functools.partial(_encoder_pre_kernel, tt=tt, t_true=T),
        out_shape=jax.ShapeDtypeStruct((B, nt * tt, cemb_p), jnp.float32),
        grid_spec=pltpu.PrefetchScalarGridSpec(
            num_scalar_prefetch=0,
            grid=(B, nt),
            in_specs=in_specs,
            out_specs=pl.BlockSpec((1, tt, cemb_p), lambda b, t: (b, t, 0)),
            scratch_shapes=[
                pltpu.VMEM((2, slab, cin_p), jnp.bfloat16),   # double-buffered x slab
                pltpu.SemaphoreType.DMA((2,)),
            ],
        ),
        compiler_params=pltpu.CompilerParams(
            # Batch axis shards across TensorCores (v7x megacore); time axis must stay
            # sequential because of the cross-step slab prefetch chain.
            dimension_semantics=("parallel", "arbitrary"),
            vmem_limit_bytes=32 * 1024 * 1024,   # few MB actually used; safe on v7x 64 MiB/TC
        ),
    )(xp, w1, s1, b1, w2, s2, b2, w3, s3, b3, lw, lb)

    # NOTE: rows >= T in the last tile and channels >= Cemb are padding (garbage / zeros);
    # they are removed here and must never be consumed raw.
    if nt * tt != T:
        out = out[:, :T, :]
    if cemb_p != Cemb:
        out = out[:, :, :Cemb]
    return out


# ------------------------ pure-JAX reference (eval mode) --------------------- #

def encoder_pre_reference(x, params):
    h = x.astype(jnp.float32)
    B, T, _ = x.shape
    for (w, b, gamma, beta, mean, var) in params["convs"]:
        hp = jnp.pad(h, ((0, 0), (PAD, PAD), (0, 0)))
        out = jnp.zeros((B, T, w.shape[0]), jnp.float32) + b[None, None, :]
        for k in range(K):
            out = out + jnp.einsum("btc,oc->bto", hp[:, k:k + T, :], w[:, :, k],
                                   precision="highest")
        out = (out - mean) / jnp.sqrt(var + BN_EPS) * gamma + beta
        h = jnp.maximum(out, 0.0)
    y = jnp.einsum("btc,oc->bto", h, params["lin_w"], precision="highest") + params["lin_b"]
    return jnp.maximum(y, 0.0)


# ------------------------------ parameter init ------------------------------- #

def init_params(key, in_channels, emb_channels):
    keys = iter(jax.random.split(key, 32))
    convs = []
    cin = in_channels
    for _ in range(3):
        w = 0.2 * jax.random.normal(next(keys), (emb_channels, cin, K), jnp.float32)
        b = 0.1 * jax.random.normal(next(keys), (emb_channels,), jnp.float32)
        gamma = 1.0 + 0.1 * jax.random.normal(next(keys), (emb_channels,), jnp.float32)
        beta = 0.1 * jax.random.normal(next(keys), (emb_channels,), jnp.float32)
        mean = 0.1 * jax.random.normal(next(keys), (emb_channels,), jnp.float32)
        var = 0.5 + jax.random.uniform(next(keys), (emb_channels,), jnp.float32)
        convs.append((w, b, gamma, beta, mean, var))
        cin = emb_channels
    lin_w = 0.2 * jax.random.normal(next(keys), (emb_channels, emb_channels), jnp.float32)
    lin_b = 0.1 * jax.random.normal(next(keys), (emb_channels,), jnp.float32)
    return {"convs": convs, "lin_w": lin_w, "lin_b": lin_b}


def _check(out, ref):
    # Error budget for bf16 MXU operands (f32 accumulate) over 4 chained matmuls, compared
    # against an f32 'highest'-precision reference: ~2.5% of the output scale absolute
    # (ReLU-cutoff flips of near-zero pre-activations) plus 5% relative.
    atol = max(2.5e-2 * float(jnp.max(jnp.abs(ref))), 5e-2)
    np.testing.assert_allclose(np.asarray(out), np.asarray(ref), rtol=5e-2, atol=atol)


if __name__ == "__main__":
    key = jax.random.PRNGKey(0)
    kx, kx2, kp = jax.random.split(key, 3)

    in_channels, emb_channels = 8, 32
    params = init_params(kp, in_channels, emb_channels)

    # Case 1: single time tile (B=2, T=16).
    x = jax.random.normal(kx, (2, 16, in_channels), jnp.float32)
    out = jax.block_until_ready(encoder_pre(x, params))
    _check(out, encoder_pre_reference(x, params))

    # Case 2: multi-tile streaming path with a partial last tile (B=2, T=40, tile=16):
    # exercises the manual double-buffered slab DMA and the sequence-edge masks.
    x2 = jax.random.normal(kx2, (2, 40, in_channels), jnp.float32)
    out2 = jax.block_until_ready(encoder_pre(x2, params, t_tile_max=16))
    _check(out2, encoder_pre_reference(x2, params))

    print("KERNEL_OK")
</pallas_src>

<mosaic_0001>
module attributes {stable_mosaic.version = 11 : i64} {
  func.func @_encoder_pre_kernel(%arg0: i32, %arg1: i32, %arg2: memref<2x32x128xbf16, #tpu.memory_space<any>>, %arg3: memref<640x128xbf16, #tpu.memory_space<vmem>>, %arg4: memref<1x128xf32, #tpu.memory_space<vmem>>, %arg5: memref<1x128xf32, #tpu.memory_space<vmem>>, %arg6: memref<640x128xbf16, #tpu.memory_space<vmem>>, %arg7: memref<1x128xf32, #tpu.memory_space<vmem>>, %arg8: memref<1x128xf32, #tpu.memory_space<vmem>>, %arg9: memref<640x128xbf16, #tpu.memory_space<vmem>>, %arg10: memref<1x128xf32, #tpu.memory_space<vmem>>, %arg11: memref<1x128xf32, #tpu.memory_space<vmem>>, %arg12: memref<128x128xbf16, #tpu.memory_space<vmem>>, %arg13: memref<1x128xf32, #tpu.memory_space<vmem>>, %arg14: memref<1x16x128xf32, #tpu.memory_space<vmem>>, %arg15: memref<2x32x128xbf16, #tpu.memory_space<vmem>>, %arg16: memref<2x!tpu.dma_semaphore, #tpu.memory_space<semaphore_mem>>) attributes {dimension_semantics = [#tpu.dimension_semantics<parallel>, #tpu.dimension_semantics<arbitrary>], iteration_bounds = array<i64: 2, 1>, scalar_prefetch = 0 : i64, scratch_operands = 2 : i64, tpu.core_type = #tpu.core_type<tc>, window_params = [{}, {pipeline_mode = #tpu.pipeline_mode<synchronous>, transform_indices = @transform_1, window_bounds = array<i64: 640, 128>}, {pipeline_mode = #tpu.pipeline_mode<synchronous>, transform_indices = @transform_2, window_bounds = array<i64: 1, 128>}, {pipeline_mode = #tpu.pipeline_mode<synchronous>, transform_indices = @transform_3, window_bounds = array<i64: 1, 128>}, {pipeline_mode = #tpu.pipeline_mode<synchronous>, transform_indices = @transform_4, window_bounds = array<i64: 640, 128>}, {pipeline_mode = #tpu.pipeline_mode<synchronous>, transform_indices = @transform_5, window_bounds = array<i64: 1, 128>}, {pipeline_mode = #tpu.pipeline_mode<synchronous>, transform_indices = @transform_6, window_bounds = array<i64: 1, 128>}, {pipeline_mode = #tpu.pipeline_mode<synchronous>, transform_indices = @transform_7, window_bounds = array<i64: 640, 128>}, {pipeline_mode = #tpu.pipeline_mode<synchronous>, transform_indices = @transform_8, window_bounds = array<i64: 1, 128>}, {pipeline_mode = #tpu.pipeline_mode<synchronous>, transform_indices = @transform_9, window_bounds = array<i64: 1, 128>}, {pipeline_mode = #tpu.pipeline_mode<synchronous>, transform_indices = @transform_10, window_bounds = array<i64: 128, 128>}, {pipeline_mode = #tpu.pipeline_mode<synchronous>, transform_indices = @transform_11, window_bounds = array<i64: 1, 128>}, {transform_indices = @transform_12, window_bounds = array<i64: 1, 16, 128>}]} {
    %c2_i32 = arith.constant 2 : i32
    %c0_i32 = arith.constant 0 : i32
    %0 = arith.cmpi eq, %c2_i32, %c0_i32 : i32
    %c1_i32 = arith.constant 1 : i32
    %1 = arith.select %0, %c1_i32, %c2_i32 : i32
    %2 = arith.remsi %arg1, %1 : i32
    %c0_i32_0 = arith.constant 0 : i32
    %3 = arith.cmpi ne, %2, %c0_i32_0 : i32
    %c0_i32_1 = arith.constant 0 : i32
    %4 = arith.cmpi slt, %2, %c0_i32_1 : i32
    %c0_i32_2 = arith.constant 0 : i32
    %5 = arith.cmpi slt, %1, %c0_i32_2 : i32
    %6 = arith.xori %4, %5 : i1
    %7 = arith.andi %6, %3 : i1
    %8 = arith.addi %2, %1 : i32
    %9 = arith.select %7, %8, %2 : i32
    %c0_i32_3 = arith.constant 0 : i32
    %10 = arith.cmpi eq, %arg1, %c0_i32_3 : i32
    %11 = arith.extui %10 : i1 to i32
    %c0_i32_4 = arith.constant 0 : i32
    %12 = arith.cmpi ne, %11, %c0_i32_4 : i32
    scf.if %12 {
      %c16_i32_62 = arith.constant 16 : i32
      %114 = arith.muli %arg1, %c16_i32_62 : i32
      %c0_i32_63 = arith.constant 0 : i32
      %115 = tpu.memref_slice %arg2[%arg0, %114, %c0_i32_63] : memref<2x32x128xbf16, #tpu.memory_space<any>> -> memref<1x32x128xbf16, #tpu.memory_space<any>>
      %116 = tpu.memref_squeeze %115 : memref<1x32x128xbf16, #tpu.memory_space<any>> -> memref<32x128xbf16, #tpu.memory_space<any>>
      %c0_i32_64 = arith.constant 0 : i32
      %c0_i32_65 = arith.constant 0 : i32
      %117 = tpu.memref_slice %arg15[%9, %c0_i32_64, %c0_i32_65] : memref<2x32x128xbf16, #tpu.memory_space<vmem>> -> memref<1x32x128xbf16, #tpu.memory_space<vmem>>
      %118 = tpu.memref_squeeze %117 : memref<1x32x128xbf16, #tpu.memory_space<vmem>> -> memref<32x128xbf16, #tpu.memory_space<vmem>>
      %119 = tpu.memref_slice %arg16[%9] : memref<2x!tpu.dma_semaphore, #tpu.memory_space<semaphore_mem>> -> memref<1x!tpu.dma_semaphore, #tpu.memory_space<semaphore_mem>>
      %120 = tpu.memref_squeeze %119 : memref<1x!tpu.dma_semaphore, #tpu.memory_space<semaphore_mem>> -> memref<!tpu.dma_semaphore, #tpu.memory_space<semaphore_mem>>
      tpu.enqueue_dma source(%116 : memref<32x128xbf16, #tpu.memory_space<any>>) target(%118 : memref<32x128xbf16, #tpu.memory_space<vmem>>) target_semaphore(%120 : memref<!tpu.dma_semaphore, #tpu.memory_space<semaphore_mem>>)
    } else {
    }
    %c16_i32 = arith.constant 16 : i32
    %13 = arith.muli %arg1, %c16_i32 : i32
    %c0_i32_5 = arith.constant 0 : i32
    %14 = tpu.memref_slice %arg2[%arg0, %13, %c0_i32_5] : memref<2x32x128xbf16, #tpu.memory_space<any>> -> memref<1x32x128xbf16, #tpu.memory_space<any>>
    %15 = tpu.memref_squeeze %14 : memref<1x32x128xbf16, #tpu.memory_space<any>> -> memref<32x128xbf16, #tpu.memory_space<any>>
    %c0_i32_6 = arith.constant 0 : i32
    %c0_i32_7 = arith.constant 0 : i32
    %16 = tpu.memref_slice %arg15[%9, %c0_i32_6, %c0_i32_7] : memref<2x32x128xbf16, #tpu.memory_space<vmem>> -> memref<1x32x128xbf16, #tpu.memory_space<vmem>>
    %17 = tpu.memref_squeeze %16 : memref<1x32x128xbf16, #tpu.memory_space<vmem>> -> memref<32x128xbf16, #tpu.memory_space<vmem>>
    %18 = tpu.memref_slice %arg16[%9] : memref<2x!tpu.dma_semaphore, #tpu.memory_space<semaphore_mem>> -> memref<1x!tpu.dma_semaphore, #tpu.memory_space<semaphore_mem>>
    %19 = tpu.memref_squeeze %18 : memref<1x!tpu.dma_semaphore, #tpu.memory_space<semaphore_mem>> -> memref<!tpu.dma_semaphore, #tpu.memory_space<semaphore_mem>>
    tpu.wait_dma2 semaphore(%19 : memref<!tpu.dma_semaphore, #tpu.memory_space<semaphore_mem>>) src(%15 : memref<32x128xbf16, #tpu.memory_space<any>>) dst(%17 : memref<32x128xbf16, #tpu.memory_space<vmem>>)
    %c1_i32_8 = arith.constant 1 : i32
    %20 = arith.addi %arg1, %c1_i32_8 : i32
    %c1_i32_9 = arith.constant 1 : i32
    %21 = arith.cmpi slt, %20, %c1_i32_9 : i32
    %22 = arith.extui %21 : i1 to i32
    %c0_i32_10 = arith.constant 0 : i32
    %23 = arith.cmpi ne, %22, %c0_i32_10 : i32
    scf.if %23 {
      %c1_i32_62 = arith.constant 1 : i32
      %114 = arith.addi %arg1, %c1_i32_62 : i32
      %c1_i32_63 = arith.constant 1 : i32
      %115 = arith.subi %c1_i32_63, %9 : i32
      %c16_i32_64 = arith.constant 16 : i32
      %116 = arith.muli %114, %c16_i32_64 : i32
      %c0_i32_65 = arith.constant 0 : i32
      %117 = tpu.memref_slice %arg2[%arg0, %116, %c0_i32_65] : memref<2x32x128xbf16, #tpu.memory_space<any>> -> memref<1x32x128xbf16, #tpu.memory_space<any>>
      %118 = tpu.memref_squeeze %117 : memref<1x32x128xbf16, #tpu.memory_space<any>> -> memref<32x128xbf16, #tpu.memory_space<any>>
      %c0_i32_66 = arith.constant 0 : i32
      %c0_i32_67 = arith.constant 0 : i32
      %119 = tpu.memref_slice %arg15[%115, %c0_i32_66, %c0_i32_67] : memref<2x32x128xbf16, #tpu.memory_space<vmem>> -> memref<1x32x128xbf16, #tpu.memory_space<vmem>>
      %120 = tpu.memref_squeeze %119 : memref<1x32x128xbf16, #tpu.memory_space<vmem>> -> memref<32x128xbf16, #tpu.memory_space<vmem>>
      %121 = tpu.memref_slice %arg16[%115] : memref<2x!tpu.dma_semaphore, #tpu.memory_space<semaphore_mem>> -> memref<1x!tpu.dma_semaphore, #tpu.memory_space<semaphore_mem>>
      %122 = tpu.memref_squeeze %121 : memref<1x!tpu.dma_semaphore, #tpu.memory_space<semaphore_mem>> -> memref<!tpu.dma_semaphore, #tpu.memory_space<semaphore_mem>>
      tpu.enqueue_dma source(%118 : memref<32x128xbf16, #tpu.memory_space<any>>) target(%120 : memref<32x128xbf16, #tpu.memory_space<vmem>>) target_semaphore(%122 : memref<!tpu.dma_semaphore, #tpu.memory_space<semaphore_mem>>)
    } else {
    }
    %24 = tpu.iota {dimensions = array<i32: 0>} : vector<24x1xi32>
    %c16_i32_11 = arith.constant 16 : i32
    %25 = arith.muli %arg1, %c16_i32_11 : i32
    %c4_i32 = arith.constant 4 : i32
    %26 = arith.subi %25, %c4_i32 : i32
    %27 = vector.broadcast %26 : i32 to vector<24x1xi32>
    %28 = arith.addi %24, %27 : vector<24x1xi32>
    %c0_i32_12 = arith.constant 0 : i32
    %29 = vector.broadcast %c0_i32_12 : i32 to vector<24x1xi32>
    %30 = arith.cmpi sge, %28, %29 : vector<24x1xi32>
    %c16_i32_13 = arith.constant 16 : i32
    %31 = vector.broadcast %c16_i32_13 : i32 to vector<24x1xi32>
    %32 = arith.cmpi slt, %28, %31 : vector<24x1xi32>
    %33 = arith.andi %30, %32 : vector<24x1xi1>
    %34 = vector.extract_strided_slice %33 {offsets = [2, 0], sizes = [20, 1], strides = [1, 1]} : vector<24x1xi1> to vector<20x1xi1>
    %c0_i32_14 = arith.constant 0 : i32
    %c0_i32_15 = arith.constant 0 : i32
    %35 = tpu.memref_slice %arg15[%9, %c0_i32_14, %c0_i32_15] : memref<2x32x128xbf16, #tpu.memory_space<vmem>> -> memref<1x32x128xbf16, #tpu.memory_space<vmem>>
    %36 = tpu.memref_squeeze %35 : memref<1x32x128xbf16, #tpu.memory_space<vmem>> -> memref<32x128xbf16, #tpu.memory_space<vmem>>
    %c2 = arith.constant 2 : index
    %c0 = arith.constant 0 : index
    %37 = vector.load %36[%c2, %c0] : memref<32x128xbf16, #tpu.memory_space<vmem>>, vector<24x128xbf16>
    %c0_i32_16 = arith.constant 0 : i32
    %c0_i32_17 = arith.constant 0 : i32
    %38 = tpu.memref_slice %arg15[%9, %c0_i32_16, %c0_i32_17] : memref<2x32x128xbf16, #tpu.memory_space<vmem>> -> memref<1x32x128xbf16, #tpu.memory_space<vmem>>
    %39 = tpu.memref_squeeze %38 : memref<1x32x128xbf16, #tpu.memory_space<vmem>> -> memref<32x128xbf16, #tpu.memory_space<vmem>>
    %c3 = arith.constant 3 : index
    %c0_18 = arith.constant 0 : index
    %40 = vector.load %39[%c3, %c0_18] : memref<32x128xbf16, #tpu.memory_space<vmem>>, vector<24x128xbf16>
    %c0_i32_19 = arith.constant 0 : i32
    %c0_i32_20 = arith.constant 0 : i32
    %41 = tpu.memref_slice %arg15[%9, %c0_i32_19, %c0_i32_20] : memref<2x32x128xbf16, #tpu.memory_space<vmem>> -> memref<1x32x128xbf16, #tpu.memory_space<vmem>>
    %42 = tpu.memref_squeeze %41 : memref<1x32x128xbf16, #tpu.memory_space<vmem>> -> memref<32x128xbf16, #tpu.memory_space<vmem>>
    %c4 = arith.constant 4 : index
    %c0_21 = arith.constant 0 : index
    %43 = vector.load %42[%c4, %c0_21] : memref<32x128xbf16, #tpu.memory_space<vmem>>, vector<24x128xbf16>
    %c0_i32_22 = arith.constant 0 : i32
    %c0_i32_23 = arith.constant 0 : i32
    %44 = tpu.memref_slice %arg15[%9, %c0_i32_22, %c0_i32_23] : memref<2x32x128xbf16, #tpu.memory_space<vmem>> -> memref<1x32x128xbf16, #tpu.memory_space<vmem>>
    %45 = tpu.memref_squeeze %44 : memref<1x32x128xbf16, #tpu.memory_space<vmem>> -> memref<32x128xbf16, #tpu.memory_space<vmem>>
    %c5 = arith.constant 5 : index
    %c0_24 = arith.constant 0 : index
    %46 = vector.load %45[%c5, %c0_24] : memref<32x128xbf16, #tpu.memory_space<vmem>>, vector<24x128xbf16>
    %c0_i32_25 = arith.constant 0 : i32
    %c0_i32_26 = arith.constant 0 : i32
    %47 = tpu.memref_slice %arg15[%9, %c0_i32_25, %c0_i32_26] : memref<2x32x128xbf16, #tpu.memory_space<vmem>> -> memref<1x32x128xbf16, #tpu.memory_space<vmem>>
    %48 = tpu.memref_squeeze %47 : memref<1x32x128xbf16, #tpu.memory_space<vmem>> -> memref<32x128xbf16, #tpu.memory_space<vmem>>
    %c6 = arith.constant 6 : index
    %c0_27 = arith.constant 0 : index
    %49 = vector.load %48[%c6, %c0_27] : memref<32x128xbf16, #tpu.memory_space<vmem>>, vector<24x128xbf16>
    %50 = tpu.concatenate %37, %40, %43, %46, %49 in 1 : vector<24x128xbf16>, vector<24x128xbf16>, vector<24x128xbf16>, vector<24x128xbf16>, vector<24x128xbf16> -> vector<24x640xbf16>
    %c0_28 = arith.constant 0 : index
    %c0_29 = arith.constant 0 : index
    %51 = vector.load %arg3[%c0_28, %c0_29] : memref<640x128xbf16, #tpu.memory_space<vmem>>, vector<640x128xbf16>
    %cst = arith.constant dense<0.000000e+00> : vector<24x128xf32>
    %52 = tpu.matmul %50, %51, %cst {dimension_numbers = #tpu.dot_dimension_numbers<[1], [0], [0], [1], [0, 0, 1, 1], [], []>} : vector<24x640xbf16>, vector<640x128xbf16>, vector<24x128xf32> -> vector<24x128xf32>
    %c0_30 = arith.constant 0 : index
    %c0_31 = arith.constant 0 : index
    %53 = vector.load %arg4[%c0_30, %c0_31] : memref<1x128xf32, #tpu.memory_space<vmem>>, vector<1x128xf32>
    %54 = vector.broadcast %53 : vector<1x128xf32> to vector<24x128xf32>
    %55 = arith.mulf %52, %54 : vector<24x128xf32>
    %c0_32 = arith.constant 0 : index
    %c0_33 = arith.constant 0 : index
    %56 = vector.load %arg5[%c0_32, %c0_33] : memref<1x128xf32, #tpu.memory_space<vmem>>, vector<1x128xf32>
    %57 = vector.broadcast %56 : vector<1x128xf32> to vector<24x128xf32>
    %58 = arith.addf %55, %57 : vector<24x128xf32>
    %cst_34 = arith.constant 0.000000e+00 : f32
    %59 = vector.broadcast %cst_34 : f32 to vector<24x128xf32>
    %60 = arith.maximumf %58, %59 : vector<24x128xf32>
    %cst_35 = arith.constant 0.000000e+00 : f32
    %61 = vector.shape_cast %33 : vector<24x1xi1> to vector<24x1xi1>
    %62 = vector.broadcast %61 : vector<24x1xi1> to vector<24x128xi1>
    %63 = vector.broadcast %cst_35 : f32 to vector<24x128xf32>
    %64 = arith.select %62, %60, %63 : vector<24x128xi1>, vector<24x128xf32>
    %65 = arith.truncf %64 : vector<24x128xf32> to vector<24x128xbf16>
    %66 = vector.extract_strided_slice %65 {offsets = [0, 0], sizes = [20, 128], strides = [1, 1]} : vector<24x128xbf16> to vector<20x128xbf16>
    %67 = vector.extract_strided_slice %65 {offsets = [1, 0], sizes = [20, 128], strides = [1, 1]} : vector<24x128xbf16> to vector<20x128xbf16>
    %68 = vector.extract_strided_slice %65 {offsets = [2, 0], sizes = [20, 128], strides = [1, 1]} : vector<24x128xbf16> to vector<20x128xbf16>
    %69 = vector.extract_strided_slice %65 {offsets = [3, 0], sizes = [20, 128], strides = [1, 1]} : vector<24x128xbf16> to vector<20x128xbf16>
    %70 = vector.extract_strided_slice %65 {offsets = [4, 0], sizes = [20, 128], strides = [1, 1]} : vector<24x128xbf16> to vector<20x128xbf16>
    %71 = tpu.concatenate %66, %67, %68, %69, %70 in 1 : vector<20x128xbf16>, vector<20x128xbf16>, vector<20x128xbf16>, vector<20x128xbf16>, vector<20x128xbf16> -> vector<20x640xbf16>
    %c0_36 = arith.constant 0 : index
    %c0_37 = arith.constant 0 : index
    %72 = vector.load %arg6[%c0_36, %c0_37] : memref<640x128xbf16, #tpu.memory_space<vmem>>, vector<640x128xbf16>
    %cst_38 = arith.constant dense<0.000000e+00> : vector<20x128xf32>
    %73 = tpu.matmul %71, %72, %cst_38 {dimension_numbers = #tpu.dot_dimension_numbers<[1], [0], [0], [1], [0, 0, 1, 1], [], []>} : vector<20x640xbf16>, vector<640x128xbf16>, vector<20x128xf32> -> vector<20x128xf32>
    %c0_39 = arith.constant 0 : index
    %c0_40 = arith.constant 0 : index
    %74 = vector.load %arg7[%c0_39, %c0_40] : memref<1x128xf32, #tpu.memory_space<vmem>>, vector<1x128xf32>
    %75 = vector.broadcast %74 : vector<1x128xf32> to vector<20x128xf32>
    %76 = arith.mulf %73, %75 : vector<20x128xf32>
    %c0_41 = arith.constant 0 : index
    %c0_42 = arith.constant 0 : index
    %77 = vector.load %arg8[%c0_41, %c0_42] : memref<1x128xf32, #tpu.memory_space<vmem>>, vector<1x128xf32>
    %78 = vector.broadcast %77 : vector<1x128xf32> to vector<20x128xf32>
    %79 = arith.addf %76, %78 : vector<20x128xf32>
    %cst_43 = arith.constant 0.000000e+00 : f32
    %80 = vector.broadcast %cst_43 : f32 to vector<20x128xf32>
    %81 = arith.maximumf %79, %80 : vector<20x128xf32>
    %cst_44 = arith.constant 0.000000e+00 : f32
    %82 = vector.shape_cast %34 : vector<20x1xi1> to vector<20x1xi1>
    %83 = vector.broadcast %82 : vector<20x1xi1> to vector<20x128xi1>
    %84 = vector.broadcast %cst_44 : f32 to vector<20x128xf32>
    %85 = arith.select %83, %81, %84 : vector<20x128xi1>, vector<20x128xf32>
    %86 = arith.truncf %85 : vector<20x128xf32> to vector<20x128xbf16>
    %87 = vector.extract_strided_slice %86 {offsets = [0, 0], sizes = [16, 128], strides = [1, 1]} : vector<20x128xbf16> to vector<16x128xbf16>
    %88 = vector.extract_strided_slice %86 {offsets = [1, 0], sizes = [16, 128], strides = [1, 1]} : vector<20x128xbf16> to vector<16x128xbf16>
    %89 = vector.extract_strided_slice %86 {offsets = [2, 0], sizes = [16, 128], strides = [1, 1]} : vector<20x128xbf16> to vector<16x128xbf16>
    %90 = vector.extract_strided_slice %86 {offsets = [3, 0], sizes = [16, 128], strides = [1, 1]} : vector<20x128xbf16> to vector<16x128xbf16>
    %91 = vector.extract_strided_slice %86 {offsets = [4, 0], sizes = [16, 128], strides = [1, 1]} : vector<20x128xbf16> to vector<16x128xbf16>
    %92 = tpu.concatenate %87, %88, %89, %90, %91 in 1 : vector<16x128xbf16>, vector<16x128xbf16>, vector<16x128xbf16>, vector<16x128xbf16>, vector<16x128xbf16> -> vector<16x640xbf16>
    %c0_45 = arith.constant 0 : index
    %c0_46 = arith.constant 0 : index
    %93 = vector.load %arg9[%c0_45, %c0_46] : memref<640x128xbf16, #tpu.memory_space<vmem>>, vector<640x128xbf16>
    %cst_47 = arith.constant dense<0.000000e+00> : vector<16x128xf32>
    %94 = tpu.matmul %92, %93, %cst_47 {dimension_numbers = #tpu.dot_dimension_numbers<[1], [0], [0], [1], [0, 0, 1, 1], [], []>} : vector<16x640xbf16>, vector<640x128xbf16>, vector<16x128xf32> -> vector<16x128xf32>
    %c0_48 = arith.constant 0 : index
    %c0_49 = arith.constant 0 : index
    %95 = vector.load %arg10[%c0_48, %c0_49] : memref<1x128xf32, #tpu.memory_space<vmem>>, vector<1x128xf32>
    %96 = vector.broadcast %95 : vector<1x128xf32> to vector<16x128xf32>
    %97 = arith.mulf %94, %96 : vector<16x128xf32>
    %c0_50 = arith.constant 0 : index
    %c0_51 = arith.constant 0 : index
    %98 = vector.load %arg11[%c0_50, %c0_51] : memref<1x128xf32, #tpu.memory_space<vmem>>, vector<1x128xf32>
    %99 = vector.broadcast %98 : vector<1x128xf32> to vector<16x128xf32>
    %100 = arith.addf %97, %99 : vector<16x128xf32>
    %cst_52 = arith.constant 0.000000e+00 : f32
    %101 = vector.broadcast %cst_52 : f32 to vector<16x128xf32>
    %102 = arith.maximumf %100, %101 : vector<16x128xf32>
    %103 = arith.truncf %102 : vector<16x128xf32> to vector<16x128xbf16>
    %c0_53 = arith.constant 0 : index
    %c0_54 = arith.constant 0 : index
    %104 = vector.load %arg12[%c0_53, %c0_54] : memref<128x128xbf16, #tpu.memory_space<vmem>>, vector<128x128xbf16>
    %cst_55 = arith.constant dense<0.000000e+00> : vector<16x128xf32>
    %105 = tpu.matmul %103, %104, %cst_55 {dimension_numbers = #tpu.dot_dimension_numbers<[1], [0], [0], [1], [0, 0, 1, 1], [], []>} : vector<16x128xbf16>, vector<128x128xbf16>, vector<16x128xf32> -> vector<16x128xf32>
    %c0_56 = arith.constant 0 : index
    %c0_57 = arith.constant 0 : index
    %106 = vector.load %arg13[%c0_56, %c0_57] : memref<1x128xf32, #tpu.memory_space<vmem>>, vector<1x128xf32>
    %107 = vector.broadcast %106 : vector<1x128xf32> to vector<16x128xf32>
    %108 = arith.addf %105, %107 : vector<16x128xf32>
    %cst_58 = arith.constant 0.000000e+00 : f32
    %109 = vector.broadcast %cst_58 : f32 to vector<16x128xf32>
    %110 = arith.maximumf %108, %109 : vector<16x128xf32>
    %c0_59 = arith.constant 0 : index
    %c0_60 = arith.constant 0 : index
    %c0_61 = arith.constant 0 : index
    %111 = vector.load %arg14[%c0_59, %c0_60, %c0_61] : memref<1x16x128xf32, #tpu.memory_space<vmem>>, vector<1x16x128xf32>
    %112 = vector.shape_cast %111 : vector<1x16x128xf32> to vector<16x128xf32>
    %113 = vector.shape_cast %110 : vector<16x128xf32> to vector<1x16x128xf32>
    tpu.vector_store %arg14[%c0_59, %c0_60, %c0_61], %113 {strides = array<i32>} : memref<1x16x128xf32, #tpu.memory_space<vmem>>, vector<1x16x128xf32>,
    return
  }
  func.func @transform_1(%arg0: i32, %arg1: i32) -> (i32, i32) {
    %c0_i32 = arith.constant 0 : i32
    %c0_i32_0 = arith.constant 0 : i32
    %c0_i32_1 = arith.constant 0 : i32
    return %c0_i32, %c0_i32_0 : i32, i32
  }
  func.func @transform_2(%arg0: i32, %arg1: i32) -> (i32, i32) {
    %c0_i32 = arith.constant 0 : i32
    %c0_i32_0 = arith.constant 0 : i32
    %c0_i32_1 = arith.constant 0 : i32
    return %c0_i32, %c0_i32_0 : i32, i32
  }
  func.func @transform_3(%arg0: i32, %arg1: i32) -> (i32, i32) {
    %c0_i32 = arith.constant 0 : i32
    %c0_i32_0 = arith.constant 0 : i32
    %c0_i32_1 = arith.constant 0 : i32
    return %c0_i32, %c0_i32_0 : i32, i32
  }
  func.func @transform_4(%arg0: i32, %arg1: i32) -> (i32, i32) {
    %c0_i32 = arith.constant 0 : i32
    %c0_i32_0 = arith.constant 0 : i32
    %c0_i32_1 = arith.constant 0 : i32
    return %c0_i32, %c0_i32_0 : i32, i32
  }
  func.func @transform_5(%arg0: i32, %arg1: i32) -> (i32, i32) {
    %c0_i32 = arith.constant 0 : i32
    %c0_i32_0 = arith.constant 0 : i32
    %c0_i32_1 = arith.constant 0 : i32
    return %c0_i32, %c0_i32_0 : i32, i32
  }
  func.func @transform_6(%arg0: i32, %arg1: i32) -> (i32, i32) {
    %c0_i32 = arith.constant 0 : i32
    %c0_i32_0 = arith.constant 0 : i32
    %c0_i32_1 = arith.constant 0 : i32
    return %c0_i32, %c0_i32_0 : i32, i32
  }
  func.func @transform_7(%arg0: i32, %arg1: i32) -> (i32, i32) {
    %c0_i32 = arith.constant 0 : i32
    %c0_i32_0 = arith.constant 0 : i32
    %c0_i32_1 = arith.constant 0 : i32
    return %c0_i32, %c0_i32_0 : i32, i32
  }
  func.func @transform_8(%arg0: i32, %arg1: i32) -> (i32, i32) {
    %c0_i32 = arith.constant 0 : i32
    %c0_i32_0 = arith.constant 0 : i32
    %c0_i32_1 = arith.constant 0 : i32
    return %c0_i32, %c0_i32_0 : i32, i32
  }
  func.func @transform_9(%arg0: i32, %arg1: i32) -> (i32, i32) {
    %c0_i32 = arith.constant 0 : i32
    %c0_i32_0 = arith.constant 0 : i32
    %c0_i32_1 = arith.constant 0 : i32
    return %c0_i32, %c0_i32_0 : i32, i32
  }
  func.func @transform_10(%arg0: i32, %arg1: i32) -> (i32, i32) {
    %c0_i32 = arith.constant 0 : i32
    %c0_i32_0 = arith.constant 0 : i32
    %c0_i32_1 = arith.constant 0 : i32
    return %c0_i32, %c0_i32_0 : i32, i32
  }
  func.func @transform_11(%arg0: i32, %arg1: i32) -> (i32, i32) {
    %c0_i32 = arith.constant 0 : i32
    %c0_i32_0 = arith.constant 0 : i32
    %c0_i32_1 = arith.constant 0 : i32
    return %c0_i32, %c0_i32_0 : i32, i32
  }
  func.func @transform_12(%arg0: i32, %arg1: i32) -> (i32, i32, i32) {
    %c0_i32 = arith.constant 0 : i32
    %c0_i32_0 = arith.constant 0 : i32
    return %arg0, %arg1, %c0_i32 : i32, i32, i32
  }
}

</mosaic_0001>

<llo_original>
// kernel: tpu_custom_call.1
$region0: #{tpu_custom_call.1}
  #allocation0 [shape = 'u32[]', space=smem, size = 0x4, offset = 0x4, fixed_abs, tag = 'smem constant byte address 0x4 - core index']
  #allocation1 [shape = 'u32[144,128]{1,0:T(1,128)}', space=vmem, size = 0x12000, scoped, tag = 'internal scratch']
  #allocation2 [shape = 'bf16[2,32,128]{2,1,0:T(8,128)(2,1)}', space=vmem, size = 0x4000, scoped, tag = 'scratch operand']
  #allocation3 [shape = 's32[2]{0}', space=sflag, size = 0x8, scoped, tag = 'scratch operand']
  #allocation13 [shape = 's32[]', space=sflag, size = 0x4, offset = 0, fixed_abs, tag = 'sflag constant byte address 0x0 - dummy sync flag']
  #allocation14 [shape = 's32[]', space=sflag, size = 0x4, offset = 0, fixed_abs, tag = 'sflag constant byte address 0x0 - dummy sync flag']
  #allocation15 [shape = 'u32[]', space=smem, size = 0x4, offset = 0x44, fixed_abs, tag = 'smem constant byte address 0x44 - assertion arg 0']
  #allocation16 [shape = 'u32[]', space=smem, size = 0x4, offset = 0x48, fixed_abs, tag = 'smem constant byte address 0x48 - assertion arg 1']
  #allocation17 [shape = 's32[]', space=sflag, size = 0x4, offset = 0, fixed_abs, tag = 'sflag constant byte address 0x0 - dummy sync flag']
  #allocation18 [shape = 's32[]', space=sflag, size = 0x4, offset = 0, fixed_abs, tag = 'sflag constant byte address 0x0 - dummy sync flag']
  %s0 = inlined_call_operand.hbm [shape: bf16[2,32,128], index: 0, kind: input, shape index: {}]
  %s1 = inlined_call_operand.hbm [shape: bf16[640,128], index: 1, kind: input, shape index: {}]
  %s2 = inlined_call_operand.vmem [shape: f32[1,128], index: 2, kind: input, shape index: {}]
  %s3 = inlined_call_operand.vmem [shape: f32[1,128], index: 3, kind: input, shape index: {}]
  %s4 = inlined_call_operand.hbm [shape: bf16[640,128], index: 4, kind: input, shape index: {}]
  %s5 = inlined_call_operand.vmem [shape: f32[1,128], index: 5, kind: input, shape index: {}]
  %s6 = inlined_call_operand.vmem [shape: f32[1,128], index: 6, kind: input, shape index: {}]
  %s7 = inlined_call_operand.hbm [shape: bf16[640,128], index: 7, kind: input, shape index: {}]
  %s8 = inlined_call_operand.vmem [shape: f32[1,128], index: 8, kind: input, shape index: {}]
  %s9 = inlined_call_operand.vmem [shape: f32[1,128], index: 9, kind: input, shape index: {}]
  %s10 = inlined_call_operand.hbm [shape: bf16[128,128], index: 10, kind: input, shape index: {}]
  %s11 = inlined_call_operand.vmem [shape: f32[1,128], index: 11, kind: input, shape index: {}]
  %s12 = inlined_call_operand.hbm [shape: f32[2,16,128], index: 12, kind: output, shape index: {}]
  %s13 = sld [smem:[#allocation0]]
  $region109: #{tpu_custom_call.1} parent=0
    _
  %s15 = ssub.s32 1, %s13
  %s16 = scalar_select 0, %s15, %s13
  $region1: #{tpu_custom_call.1} parent=0
    #allocation4 [shape = 'u8[163840]{0}', space=vmem, size = 0x28000, scoped, tag = 'input window, operand 1, single buffered']
    #allocation5 [shape = 's32[2]{0}', space=sflag, size = 0x8, scoped, tag = 'scoped memory for tpu_custom_call.1']
    #allocation6 [shape = 's32[2]{0}', space=sflag, size = 0x8, scoped, tag = 'scoped memory for tpu_custom_call.1']
    #allocation7 [shape = 'u8[163840]{0}', space=vmem, size = 0x28000, scoped, tag = 'input window, operand 4, single buffered']
    #allocation8 [shape = 's32[1]{0}', space=sflag, size = 0x4, scoped, tag = 'scoped memory for tpu_custom_call.1']
    #allocation9 [shape = 'u8[163840]{0}', space=vmem, size = 0x28000, scoped, tag = 'input window, operand 7, single buffered']
    #allocation10 [shape = 'u8[32768]{0}', space=vmem, size = 0x8000, scoped, tag = 'input window, operand 10, single buffered']
    #allocation11 [shape = 's32[1]{0}', space=sflag, size = 0x4, scoped, tag = 'scoped memory for tpu_custom_call.1']
    #allocation12 [shape = 'u8[16384]{0}', space=vmem, size = 0x4000, scoped, tag = 'output window, operand 0']
    %17 = vsyncpa [#allocation5], 0
    %18 = vsyncpa [#allocation8], 0
    %19 = vsyncpa [#allocation11], 0
    %20 = vsyncpa [#allocation6], 0
    %s21 = scalar_lea.sflag [#allocation6], 1
    %22 = vsyncpa %s21, 0
    loop: start=0, step=1, limit=4
    $region2: #{tpu_custom_call.1} parent=1 // loop_pre_header
      _
    $region3: #{tpu_custom_call.1} parent=1 // loop_header
      %s24 = sphi 0, %s28
      %p25 = scmp.ge.s32.totalorder %s24, 4
      %s31 = sphi 0, %s43
      %s32 = sphi 0, %s39
      %s33 = sphi 0, %s31
      %s34 = sphi 0, %s32
      %s35 = sphi 0, %s33
      %s36 = sphi 0, %s34
      %s44 = sphi 0, %s44
      %s46 = sphi 0, %s44
      %s47 = sphi 0, %s46
      %s61 = sphi 0, %s47
      %s65 = sphi 0, %s65
      %s67 = sphi 0, %s65
      %s68 = sphi 0, %s67
      %s82 = sphi 0, %s68
      %s86 = sphi 0, %s86
      %s88 = sphi 0, %s86
      %s89 = sphi 0, %s88
      %s103 = sphi 0, %s89
      %s107 = sphi 0, %s107
      %s109 = sphi 0, %s107
      %s110 = sphi 0, %s109
      %s124 = sphi 0, %s110
      %s128 = sphi 0, %s128
      %s130 = sphi 0, %s128
      %s131 = sphi 0, %s130
      %s145 = sphi 0, %s131
      %s149 = sphi 0, %s149
      %s151 = sphi 0, %s149
      %s152 = sphi 0, %s151
      %s166 = sphi 0, %s152
      %s170 = sphi 0, %s170
      %s172 = sphi 0, %s170
      %s173 = sphi 0, %s172
      %s187 = sphi 0, %s173
      %s191 = sphi 0, %s191
      %s193 = sphi 0, %s191
      %s194 = sphi 0, %s193
      %s208 = sphi 0, %s194
      %s212 = sphi 0, %s212
      %s214 = sphi 0, %s212
      %s215 = sphi 0, %s214
      %s229 = sphi 0, %s215
      %s233 = sphi 0, %s233
      %s235 = sphi 0, %s233
      %s236 = sphi 0, %s235
      %s250 = sphi 0, %s236
      %s254 = sphi 0, %s254
      %s256 = sphi 0, %s254
      %s257 = sphi 0, %s256
      %s271 = sphi 0, %s257
      %s279 = sphi 0, %s281
      %s282 = sphi 0, %s279
      %s283 = sphi 0, %s282
      %s299 = sphi 0, %s283
    $region4: #{tpu_custom_call.1} parent=1 // loop_header_branch
      %27 = sbr.rel (%p25) target = $region8
    $region5: #{tpu_custom_call.1} parent=1 // loop_body
      %s29 = ssub.s32 %s24, 1
      %s30 = ssub.s32 %s24, 2
      %s37 = sadd.s32 1, %s32
      %p38 = scmp.ge.s32.totalorder %s37, 1
      %s39 = scalar_select %p38, 0, %s37
      %s40 = sadd.s32 1, %s31
      %s41 = scalar_select %p38, %s40, %s31
      %p42 = scmp.ge.s32.totalorder %s41, 2
      %s43 = scalar_select %p42, 0, %s41
      %s45 = sadd.s32 %s44, 1
      %p48 = scmp.eq.s32.totalorder %s24, 1
      %p49 = scmp.ne.s32.totalorder %s44, %s46
      %p50 = scmp.eq.s32.totalorder %s24, 0
      %p51 = por %p49, %p50
      %p52 = scmp.ne.s32.totalorder %s44, %s46
      %p53 = scmp.eq.s32.totalorder %s29, 1
      %p54 = por %p52, %p53
      %p55 = scmp.ne.s32.totalorder %s46, %s47
      %p56 = scmp.eq.s32.totalorder %s29, 0
      %p57 = por %p55, %p56
      %p58 = scmp.ne.s32.totalorder %s46, %s47
      %p59 = scmp.eq.s32.totalorder %s30, 1
      %p60 = por %p58, %p59
      %p62 = scmp.ne.s32.totalorder %s47, %s61
      %p63 = scmp.eq.s32.totalorder %s30, 0
      %p64 = por %p62, %p63
      %s66 = sadd.s32 %s65, 1
      %p69 = scmp.eq.s32.totalorder %s24, 1
      %p70 = scmp.ne.s32.totalorder %s65, %s67
      %p71 = scmp.eq.s32.totalorder %s24, 0
      %p72 = por %p70, %p71
      %p73 = scmp.ne.s32.totalorder %s65, %s67
      %p74 = scmp.eq.s32.totalorder %s29, 1
      %p75 = por %p73, %p74
      %p76 = scmp.ne.s32.totalorder %s67, %s68
      %p77 = scmp.eq.s32.totalorder %s29, 0
      %p78 = por %p76, %p77
      %p79 = scmp.ne.s32.totalorder %s67, %s68
      %p80 = scmp.eq.s32.totalorder %s30, 1
      %p81 = por %p79, %p80
      %p83 = scmp.ne.s32.totalorder %s68, %s82
      %p84 = scmp.eq.s32.totalorder %s30, 0
      %p85 = por %p83, %p84
      %s87 = sadd.s32 %s86, 1
      %p90 = scmp.eq.s32.totalorder %s24, 1
      %p91 = scmp.ne.s32.totalorder %s86, %s88
      %p92 = scmp.eq.s32.totalorder %s24, 0
      %p93 = por %p91, %p92
      %p94 = scmp.ne.s32.totalorder %s86, %s88
      %p95 = scmp.eq.s32.totalorder %s29, 1
      %p96 = por %p94, %p95
      %p97 = scmp.ne.s32.totalorder %s88, %s89
      %p98 = scmp.eq.s32.totalorder %s29, 0
      %p99 = por %p97, %p98
      %p100 = scmp.ne.s32.totalorder %s88, %s89
      %p101 = scmp.eq.s32.totalorder %s30, 1
      %p102 = por %p100, %p101
      %p104 = scmp.ne.s32.totalorder %s89, %s103
      %p105 = scmp.eq.s32.totalorder %s30, 0
      %p106 = por %p104, %p105
      %s108 = sadd.s32 %s107, 1
      %p111 = scmp.eq.s32.totalorder %s24, 1
      %p112 = scmp.ne.s32.totalorder %s107, %s109
      %p113 = scmp.eq.s32.totalorder %s24, 0
      %p114 = por %p112, %p113
      %p115 = scmp.ne.s32.totalorder %s107, %s109
      %p116 = scmp.eq.s32.totalorder %s29, 1
      %p117 = por %p115, %p116
      %p118 = scmp.ne.s32.totalorder %s109, %s110
      %p119 = scmp.eq.s32.totalorder %s29, 0
      %p120 = por %p118, %p119
      %p121 = scmp.ne.s32.totalorder %s109, %s110
      %p122 = scmp.eq.s32.totalorder %s30, 1
      %p123 = por %p121, %p122
      %p125 = scmp.ne.s32.totalorder %s110, %s124
      %p126 = scmp.eq.s32.totalorder %s30, 0
      %p127 = por %p125, %p126
      %s129 = sadd.s32 %s128, 1
      %p132 = scmp.eq.s32.totalorder %s24, 1
      %p133 = scmp.ne.s32.totalorder %s128, %s130
      %p134 = scmp.eq.s32.totalorder %s24, 0
      %p135 = por %p133, %p134
      %p136 = scmp.ne.s32.totalorder %s128, %s130
      %p137 = scmp.eq.s32.totalorder %s29, 1
      %p138 = por %p136, %p137
      %p139 = scmp.ne.s32.totalorder %s130, %s131
      %p140 = scmp.eq.s32.totalorder %s29, 0
      %p141 = por %p139, %p140
      %p142 = scmp.ne.s32.totalorder %s130, %s131
      %p143 = scmp.eq.s32.totalorder %s30, 1
      %p144 = por %p142, %p143
      %p146 = scmp.ne.s32.totalorder %s131, %s145
      %p147 = scmp.eq.s32.totalorder %s30, 0
      %p148 = por %p146, %p147
      %s150 = sadd.s32 %s149, 1
      %p153 = scmp.eq.s32.totalorder %s24, 1
      %p154 = scmp.ne.s32.totalorder %s149, %s151
      %p155 = scmp.eq.s32.totalorder %s24, 0
      %p156 = por %p154, %p155
      %p157 = scmp.ne.s32.totalorder %s149, %s151
      %p158 = scmp.eq.s32.totalorder %s29, 1
      %p159 = por %p157, %p158
      %p160 = scmp.ne.s32.totalorder %s151, %s152
      %p161 = scmp.eq.s32.totalorder %s29, 0
      %p162 = por %p160, %p161
      %p163 = scmp.ne.s32.totalorder %s151, %s152
      %p164 = scmp.eq.s32.totalorder %s30, 1
      %p165 = por %p163, %p164
      %p167 = scmp.ne.s32.totalorder %s152, %s166
      %p168 = scmp.eq.s32.totalorder %s30, 0
      %p169 = por %p167, %p168
      %s171 = sadd.s32 %s170, 1
      %p174 = scmp.eq.s32.totalorder %s24, 1
      %p175 = scmp.ne.s32.totalorder %s170, %s172
      %p176 = scmp.eq.s32.totalorder %s24, 0
      %p177 = por %p175, %p176
      %p178 = scmp.ne.s32.totalorder %s170, %s172
      %p179 = scmp.eq.s32.totalorder %s29, 1
      %p180 = por %p178, %p179
      %p181 = scmp.ne.s32.totalorder %s172, %s173
      %p182 = scmp.eq.s32.totalorder %s29, 0
      %p183 = por %p181, %p182
      %p184 = scmp.ne.s32.totalorder %s172, %s173
      %p185 = scmp.eq.s32.totalorder %s30, 1
      %p186 = por %p184, %p185
      %p188 = scmp.ne.s32.totalorder %s173, %s187
      %p189 = scmp.eq.s32.totalorder %s30, 0
      %p190 = por %p188, %p189
      %s192 = sadd.s32 %s191, 1
      %p195 = scmp.eq.s32.totalorder %s24, 1
      %p196 = scmp.ne.s32.totalorder %s191, %s193
      %p197 = scmp.eq.s32.totalorder %s24, 0
      %p198 = por %p196, %p197
      %p199 = scmp.ne.s32.totalorder %s191, %s193
      %p200 = scmp.eq.s32.totalorder %s29, 1
      %p201 = por %p199, %p200
      %p202 = scmp.ne.s32.totalorder %s193, %s194
      %p203 = scmp.eq.s32.totalorder %s29, 0
      %p204 = por %p202, %p203
      %p205 = scmp.ne.s32.totalorder %s193, %s194
      %p206 = scmp.eq.s32.totalorder %s30, 1
      %p207 = por %p205, %p206
      %p209 = scmp.ne.s32.totalorder %s194, %s208
      %p210 = scmp.eq.s32.totalorder %s30, 0
      %p211 = por %p209, %p210
      %s213 = sadd.s32 %s212, 1
      %p216 = scmp.eq.s32.totalorder %s24, 1
      %p217 = scmp.ne.s32.totalorder %s212, %s214
      %p218 = scmp.eq.s32.totalorder %s24, 0
      %p219 = por %p217, %p218
      %p220 = scmp.ne.s32.totalorder %s212, %s214
      %p221 = scmp.eq.s32.totalorder %s29, 1
      %p222 = por %p220, %p221
      %p223 = scmp.ne.s32.totalorder %s214, %s215
      %p224 = scmp.eq.s32.totalorder %s29, 0
      %p225 = por %p223, %p224
      %p226 = scmp.ne.s32.totalorder %s214, %s215
      %p227 = scmp.eq.s32.totalorder %s30, 1
      %p228 = por %p226, %p227
      %p230 = scmp.ne.s32.totalorder %s215, %s229
      %p231 = scmp.eq.s32.totalorder %s30, 0
      %p232 = por %p230, %p231
      %s234 = sadd.s32 %s233, 1
      %p237 = scmp.eq.s32.totalorder %s24, 1
      %p238 = scmp.ne.s32.totalorder %s233, %s235
      %p239 = scmp.eq.s32.totalorder %s24, 0
      %p240 = por %p238, %p239
      %p241 = scmp.ne.s32.totalorder %s233, %s235
      %p242 = scmp.eq.s32.totalorder %s29, 1
      %p243 = por %p241, %p242
      %p244 = scmp.ne.s32.totalorder %s235, %s236
      %p245 = scmp.eq.s32.totalorder %s29, 0
      %p246 = por %p244, %p245
      %p247 = scmp.ne.s32.totalorder %s235, %s236
      %p248 = scmp.eq.s32.totalorder %s30, 1
      %p249 = por %p247, %p248
      %p251 = scmp.ne.s32.totalorder %s236, %s250
      %p252 = scmp.eq.s32.totalorder %s30, 0
      %p253 = por %p251, %p252
      %s255 = sadd.s32 %s254, 1
      %p258 = scmp.eq.s32.totalorder %s24, 1
      %p259 = scmp.ne.s32.totalorder %s254, %s256
      %p260 = scmp.eq.s32.totalorder %s24, 0
      %p261 = por %p259, %p260
      %p262 = scmp.ne.s32.totalorder %s254, %s256
      %p263 = scmp.eq.s32.totalorder %s29, 1
      %p264 = por %p262, %p263
      %p265 = scmp.ne.s32.totalorder %s256, %s257
      %p266 = scmp.eq.s32.totalorder %s29, 0
      %p267 = por %p265, %p266
      %p268 = scmp.ne.s32.totalorder %s256, %s257
      %p269 = scmp.eq.s32.totalorder %s30, 1
      %p270 = por %p268, %p269
      %p272 = scmp.ne.s32.totalorder %s257, %s271
      %p273 = scmp.eq.s32.totalorder %s30, 0
      %p274 = por %p272, %p273
      %s275 = ssub.s32 %s31, %s43
      %s276 = ssub.s32 %s32, %s39
      %s277 = sor.u32 %s275, %s276
      %p278 = scmp.eq.s32.totalorder %s277, 0
      %s280 = sadd.s32 %s279, 1
      %s281 = scalar_select %p278, %s279, %s280
      %p284 = pneg %p278
      %p285 = scmp.eq.s32.totalorder %s24, 1
      %p286 = por %p284, %p285
      %p287 = scmp.ne.s32.totalorder %s279, %s282
      %p288 = scmp.eq.s32.totalorder %s24, 0
      %p289 = por %p287, %p288
      %p290 = scmp.ne.s32.totalorder %s279, %s282
      %p291 = scmp.eq.s32.totalorder %s29, 1
      %p292 = por %p290, %p291
      %p293 = scmp.ne.s32.totalorder %s282, %s283
      %p294 = scmp.eq.s32.totalorder %s29, 0
      %p295 = por %p293, %p294
      %p296 = scmp.ne.s32.totalorder %s282, %s283
      %p297 = scmp.eq.s32.totalorder %s30, 1
      %p298 = por %p296, %p297
      %p300 = scmp.ne.s32.totalorder %s283, %s299
      %p301 = scmp.eq.s32.totalorder %s30, 0
      %p302 = por %p300, %p301
      %p303 = scmp.le.s32.totalorder 1, %s24
      %p304 = scmp.lt.s32.totalorder %s24, 3
      %p305 = pnand %p303, %p304
      %p306 = pneg %p305
      // Predicated region
      $region9: #{tpu_custom_call.1} parent=5 // pred_check
        _
      $region10: #{tpu_custom_call.1} parent=5 // pred_check_branch
        %308 = sbr.rel (%p305) target = $region12
      $region11: #{tpu_custom_call.1} parent=5 // pred_region
        %s309 = ssub.s32 %s24, 1
        // Predicated region
        $region13: #{tpu_custom_call.1} parent=11 // pred_check
          %p310 = pneg %p57
        $region14: #{tpu_custom_call.1} parent=11 // pred_check_branch
          %312 = sbr.rel (%p310) target = $region16
        $region15: #{tpu_custom_call.1} parent=11 // pred_region
          %s314 = ssub.s32 5120, 5120
          %315 = vsyncadd [#allocation5], %s314
          %s316 = sshll.u32 [#allocation4], 4
          %s317 = int_to_ptr.vmem [resolvable:$true] %s316
          %322 = dma.hbm_to_vmem [thread:$0]  %s1, 5120, %s317, [#allocation5], 64, 64, 4
        $region16: #{tpu_custom_call.1} parent=11 // pred_fallthru
          _
        // Predicated region
        $region17: #{tpu_custom_call.1} parent=11 // pred_check
          %p323 = pneg %p78
        $region18: #{tpu_custom_call.1} parent=11 // pred_check_branch
          %325 = sbr.rel (%p323) target = $region20
        $region19: #{tpu_custom_call.1} parent=11 // pred_region
          _
        $region20: #{tpu_custom_call.1} parent=11 // pred_fallthru
          _
        // Predicated region
        $region21: #{tpu_custom_call.1} parent=11 // pred_check
          %p326 = pneg %p99
        $region22: #{tpu_custom_call.1} parent=11 // pred_check_branch
          %328 = sbr.rel (%p326) target = $region24
        $region23: #{tpu_custom_call.1} parent=11 // pred_region
          _
        $region24: #{tpu_custom_call.1} parent=11 // pred_fallthru
          _
        // Predicated region
        $region25: #{tpu_custom_call.1} parent=11 // pred_check
          %p329 = pneg %p120
        $region26: #{tpu_custom_call.1} parent=11 // pred_check_branch
          %331 = sbr.rel (%p329) target = $region28
        $region27: #{tpu_custom_call.1} parent=11 // pred_region
          %s333 = ssub.s32 5120, 5120
          %334 = vsyncadd [#allocation8], %s333
          %s335 = sshll.u32 [#allocation7], 4
          %s336 = int_to_ptr.vmem [resolvable:$true] %s335
          %341 = dma.hbm_to_vmem [thread:$0]  %s4, 5120, %s336, [#allocation8], 64, 64, 4
        $region28: #{tpu_custom_call.1} parent=11 // pred_fallthru
          _
        // Predicated region
        $region29: #{tpu_custom_call.1} parent=11 // pred_check
          %p342 = pneg %p141
        $region30: #{tpu_custom_call.1} parent=11 // pred_check_branch
          %344 = sbr.rel (%p342) target = $region32
        $region31: #{tpu_custom_call.1} parent=11 // pred_region
          _
        $region32: #{tpu_custom_call.1} parent=11 // pred_fallthru
          _
        // Predicated region
        $region33: #{tpu_custom_call.1} parent=11 // pred_check
          %p345 = pneg %p162
        $region34: #{tpu_custom_call.1} parent=11 // pred_check_branch
          %347 = sbr.rel (%p345) target = $region36
        $region35: #{tpu_custom_call.1} parent=11 // pred_region
          _
        $region36: #{tpu_custom_call.1} parent=11 // pred_fallthru
          _
        // Predicated region
        $region37: #{tpu_custom_call.1} parent=11 // pred_check
          %p348 = pneg %p183
        $region38: #{tpu_custom_call.1} parent=11 // pred_check_branch
          %350 = sbr.rel (%p348) target = $region40
        $region39: #{tpu_custom_call.1} parent=11 // pred_region
          %s352 = ssub.s32 5120, 5120
          %353 = vsyncadd [#allocation8], %s352
          %s354 = sshll.u32 [#allocation9], 4
          %s355 = int_to_ptr.vmem [resolvable:$true] %s354
          %360 = dma.hbm_to_vmem [thread:$0]  %s7, 5120, %s355, [#allocation8], 64, 64, 4
        $region40: #{tpu_custom_call.1} parent=11 // pred_fallthru
          _
        // Predicated region
        $region41: #{tpu_custom_call.1} parent=11 // pred_check
          %p361 = pneg %p204
        $region42: #{tpu_custom_call.1} parent=11 // pred_check_branch
          %363 = sbr.rel (%p361) target = $region44
        $region43: #{tpu_custom_call.1} parent=11 // pred_region
          _
        $region44: #{tpu_custom_call.1} parent=11 // pred_fallthru
          _
        // Predicated region
        $region45: #{tpu_custom_call.1} parent=11 // pred_check
          %p364 = pneg %p225
        $region46: #{tpu_custom_call.1} parent=11 // pred_check_branch
          %366 = sbr.rel (%p364) target = $region48
        $region47: #{tpu_custom_call.1} parent=11 // pred_region
          _
        $region48: #{tpu_custom_call.1} parent=11 // pred_fallthru
          _
        // Predicated region
        $region49: #{tpu_custom_call.1} parent=11 // pred_check
          %p367 = pneg %p246
        $region50: #{tpu_custom_call.1} parent=11 // pred_check_branch
          %369 = sbr.rel (%p367) target = $region52
        $region51: #{tpu_custom_call.1} parent=11 // pred_region
          %s371 = ssub.s32 1024, 1024
          %372 = vsyncadd [#allocation11], %s371
          %s373 = sshll.u32 [#allocation10], 4
          %s374 = int_to_ptr.vmem [resolvable:$true] %s373
          %379 = dma.hbm_to_vmem [thread:$0]  %s10, 1024, %s374, [#allocation11], 64, 64, 4
        $region52: #{tpu_custom_call.1} parent=11 // pred_fallthru
          _
        // Predicated region
        $region53: #{tpu_custom_call.1} parent=11 // pred_check
          %p380 = pneg %p267
        $region54: #{tpu_custom_call.1} parent=11 // pred_check_branch
          %382 = sbr.rel (%p380) target = $region56
        $region55: #{tpu_custom_call.1} parent=11 // pred_region
          _
        $region56: #{tpu_custom_call.1} parent=11 // pred_fallthru
          _
      $region12: #{tpu_custom_call.1} parent=5 // pred_fallthru
        _
      %p383 = scmp.lt.s32.totalorder %s24, 2
      // Predicated region
      $region57: #{tpu_custom_call.1} parent=5 // pred_check
        %p384 = pneg %p383
      $region58: #{tpu_custom_call.1} parent=5 // pred_check_branch
        %386 = sbr.rel (%p384) target = $region60
      $region59: #{tpu_custom_call.1} parent=5 // pred_region
        _
      $region60: #{tpu_custom_call.1} parent=5 // pred_fallthru
        _
      %p387 = scmp.le.s32.totalorder 1, %s24
      %p388 = scmp.lt.s32.totalorder %s24, 3
      %p389 = pnand %p387, %p388
      %p390 = pneg %p389
      // Predicated region
      $region61: #{tpu_custom_call.1} parent=5 // pred_check
        _
      $region62: #{tpu_custom_call.1} parent=5 // pred_check_branch
        %392 = sbr.rel (%p389) target = $region64
      $region63: #{tpu_custom_call.1} parent=5 // pred_region
        %s393 = ssub.s32 %s24, 1
        // Predicated region
        $region65: #{tpu_custom_call.1} parent=63 // pred_check
          %p394 = pneg %p57
        $region66: #{tpu_custom_call.1} parent=63 // pred_check_branch
          %396 = sbr.rel (%p394) target = $region68
        $region67: #{tpu_custom_call.1} parent=63 // pred_region
          %397 = dma.done [#allocation5], 5120
        $region68: #{tpu_custom_call.1} parent=63 // pred_fallthru
          _
        // Predicated region
        $region69: #{tpu_custom_call.1} parent=63 // pred_check
          %p398 = pneg %p120
        $region70: #{tpu_custom_call.1} parent=63 // pred_check_branch
          %400 = sbr.rel (%p398) target = $region72
        $region71: #{tpu_custom_call.1} parent=63 // pred_region
          %401 = dma.done [#allocation8], 5120
        $region72: #{tpu_custom_call.1} parent=63 // pred_fallthru
          _
        // Predicated region
        $region73: #{tpu_custom_call.1} parent=63 // pred_check
          %p402 = pneg %p183
        $region74: #{tpu_custom_call.1} parent=63 // pred_check_branch
          %404 = sbr.rel (%p402) target = $region76
        $region75: #{tpu_custom_call.1} parent=63 // pred_region
          %405 = dma.done [#allocation8], 5120
        $region76: #{tpu_custom_call.1} parent=63 // pred_fallthru
          _
        // Predicated region
        $region77: #{tpu_custom_call.1} parent=63 // pred_check
          %p406 = pneg %p246
        $region78: #{tpu_custom_call.1} parent=63 // pred_check_branch
          %408 = sbr.rel (%p406) target = $region80
        $region79: #{tpu_custom_call.1} parent=63 // pred_region
          %409 = dma.done [#allocation11], 1024
        $region80: #{tpu_custom_call.1} parent=63 // pred_fallthru
          _
        %p410 = pneg %p57
        %p411 = pneg %p54
        %p412 = pneg %p78
        %p413 = pneg %p75
        %p414 = pneg %p99
        %p415 = pneg %p96
        %p416 = pneg %p120
        %p417 = pneg %p117
        %p418 = pneg %p141
        %p419 = pneg %p138
        %p420 = pneg %p162
        %p421 = pneg %p159
        %p422 = pneg %p183
        %p423 = pneg %p180
        %p424 = pneg %p204
        %p425 = pneg %p201
        %p426 = pneg %p225
        %p427 = pneg %p222
        %p428 = pneg %p246
        %p429 = pneg %p243
        %p430 = pneg %p267
        %p431 = pneg %p264
        %p432 = pneg %p295
        %p433 = pneg %p292
        %s434 = sand.u32 %s282, 1
        %s435 = scalar_lea.sflag [#allocation6], %s434
        %s436 = sand.u32 %s282, 1
        %s437 = smul.addr %s436, 16
        %s438 = scalar_lea.vmem [#allocation12], %s437
        %s439 = smul.u32 2, %s34
        %p441 = scmp.lt.s32.totalorder %s34, 0
        %s442 = ssub.s32 0, %s34
        %s443 = scalar_select %p441, %s442, %s34
        %s444 = sand.u32 %s443, 1
        %s445 = ssub.s32 0, %s444
        %s446 = scalar_select %p441, %s445, %s444
        %p447 = scmp.ne.s32.totalorder %s446, 0
        %p448 = scmp.lt.s32.totalorder %s446, 0
        %p449 = pnand %p448, %p447
        %p450 = pneg %p449
        %s451 = sadd.s32 %s446, 2
        %s452 = scalar_select %p450, %s451, %s446
        %p453 = scmp.eq.s32.totalorder %s34, 0
        // Predicated region
        $region81: #{tpu_custom_call.1} parent=63 // pred_check
          %p454 = pneg %p453
        $region82: #{tpu_custom_call.1} parent=63 // pred_check_branch
          %456 = sbr.rel (%p454) target = $region84
        $region83: #{tpu_custom_call.1} parent=63 // pred_region
          %s457 = smul.u32 %s34, 16
          %s458 = sshra.s32 %s457, 3
          %s459 = sand.u32 %s457, 7
          %s460 = smul.u32 %s33, 4
          %s461 = sadd.s32 %s458, %s460
          %s462 = smul.addr %s461, 64
          %s463 = scalar_lea.hbm %s0, %s462
          %s464 = smul.u32 %s452, 4
          %s465 = smul.addr %s464, 4
          %s466 = scalar_lea.vmem [#allocation2], %s465
          %s467 = scalar_lea.sflag [#allocation3], %s452
          // Predicated region
          $region85: #{tpu_custom_call.1} parent=83 // pred_check
            _
          $region86: #{tpu_custom_call.1} parent=83 // pred_check_branch
            %469 = sbr.rel target = $region88
          $region87: #{tpu_custom_call.1} parent=83 // pred_region
            %470 = sst [smem:[#allocation15]] [#allocation14]
            %471 = sst [smem:[#allocation16]] [#allocation13]
          $region88: #{tpu_custom_call.1} parent=83 // pred_fallthru
            _
          %473 = shalt.err (0)
          %s475 = sshll.u32 %s466, 4
          %s476 = int_to_ptr.vmem [resolvable:$true] %s475
          %478 = dma.hbm_to_vmem [thread:$0]  %s463, 256, %s476, %s467
        $region84: #{tpu_custom_call.1} parent=63 // pred_fallthru
          _
        %s479 = smul.u32 %s34, 16
        %s480 = smul.u32 %s452, 4
        %s481 = smul.addr %s480, 4
        %s482 = scalar_lea.vmem [#allocation2], %s481
        %s483 = scalar_lea.sflag [#allocation3], %s452
        %s484 = smul.u32 4, 4
        %s485 = smul.u32 %s484, 1
        %s486 = sshll.u32 %s485, 4
        %487 = dma.done %s483, %s486
        %s488 = sadd.s32 %s34, 1
        %p489 = scmp.lt.s32.totalorder %s488, 1
        // Predicated region
        $region89: #{tpu_custom_call.1} parent=63 // pred_check
          %p490 = pneg %p489
        $region90: #{tpu_custom_call.1} parent=63 // pred_check_branch
          %492 = sbr.rel (%p490) target = $region92
        $region91: #{tpu_custom_call.1} parent=63 // pred_region
          %s493 = ssub.s32 1, %s452
          %s494 = smul.u32 %s488, 16
          %s495 = sshra.s32 %s494, 3
          %s496 = sand.u32 %s494, 7
          %s497 = smul.u32 %s33, 4
          %s498 = sadd.s32 %s495, %s497
          %s499 = smul.addr %s498, 64
          %s500 = scalar_lea.hbm %s0, %s499
          %s501 = smul.u32 %s493, 4
          %s502 = smul.addr %s501, 4
          %s503 = scalar_lea.vmem [#allocation2], %s502
          %s504 = scalar_lea.sflag [#allocation3], %s493
          // Predicated region
          $region93: #{tpu_custom_call.1} parent=91 // pred_check
            _
          $region94: #{tpu_custom_call.1} parent=91 // pred_check_branch
            %506 = sbr.rel target = $region96
          $region95: #{tpu_custom_call.1} parent=91 // pred_region
            %507 = sst [smem:[#allocation15]] [#allocation18]
            %508 = sst [smem:[#allocation16]] [#allocation17]
          $region96: #{tpu_custom_call.1} parent=91 // pred_fallthru
            _
          %510 = shalt.err (0)
          %s512 = sshll.u32 %s503, 4
          %s513 = int_to_ptr.vmem [resolvable:$true] %s512
          %515 = dma.hbm_to_vmem [thread:$0]  %s500, 256, %s513, %s504
        $region92: #{tpu_custom_call.1} parent=63 // pred_fallthru
          _
        %v516 = vlaneseq
        %v517 = vshrl.u32 %v516, 7
        %v518 = vadd.s32 %v517, 8
        %v519 = vadd.s32 %v517, 16
        %s520 = ssub.s32 %s479, 4
        %v521 = vstv %s520
        %v522 = vadd.s32 %v517, %v521
        %v523 = vadd.s32 %v518, %v521
        %v524 = vadd.s32 %v519, %v521
        %vm525 = vcmp.ge.s32.totalorder %v522, 0
        %vm526 = vcmp.ge.s32.totalorder %v523, 0
        %vm527 = vcmp.ge.s32.totalorder %v524, 0
        %vm528 = vcmp.lt.s32.totalorder %v522, 16
        %vm529 = vcmp.lt.s32.totalorder %v523, 16
        %vm530 = vcmp.lt.s32.totalorder %v524, 16
        %vm531 = vmand %vm525, %vm528
        %vm532 = vmand %vm526, %vm529
        %vm533 = vmand %vm527, %vm530
        %v534 = vld [vmem:[%s482] sm:$0xe]
        %v535 = vld [vmem:[%s482 + $0x4] sm:$0xf]
        %v536 = vld [vmem:[%s482 + $0x8] sm:$0xf]
        %v537 = vld [vmem:[%s482 + $0xc] sm:$0x1]
        %v538 = vld [vmem:[%s482 + $0xc] sm:$0x3]
        %v539 = vld [vmem:[%s482] sm:$0xc]
        %v540 = vld [vmem:[%s482 + $0xc] sm:$0x7]
        %v541 = vld [vmem:[%s482] sm:$0x8]
        %v546 = vunpack.c.l.b16 %v534
        %v547 = vunpack.c.l.b16 %v535
        %v548 = vunpack.c.l.b16 %v536
        %v549 = vunpack.c.l.b16 %v537
        %v550 = vpack.c.b16 %v547, %v546
        %v551 = vpack.c.b16 %v549, %v548
        %v553 = vunpack.c.l.b16 %v538
        %v554 = vpack.c.b16 %v553, %v548
        %vm555 = vsmask.f32 7424
        %v557 = vshrl.u32 %v550, 16
        %v559 = vshll.u32 %v550, 16
        %v561 = vrot.slane %v559, 1
        %v562 = vor.u32 %v557, %v561
        %v564 = vshll.u32 %v554, 16
        %v566 = vrot.slane %v564, 1
        %v567 = vsel %vm555, %v562, %v566
        %v568 = vshrl.u32 %v554, 16
        %v570 = vor.u32 %v568, %v566
        %v572 = vunpack.c.l.b16 %v539
        %v573 = vpack.c.b16 %v547, %v572
        %vm574 = vcmask 1046528
        %v575 = vrot.slane %v573, 1
        %v576 = vrot.slane %v554, 1
        %v577 = vsel %vm574, %v575, %v576
        %v579 = vunpack.c.l.b16 %v540
        %v580 = vpack.c.b16 %v579, %v548
        %vm581 = vsmask.f32 6400
        %v583 = vshrl.u32 %v573, 16
        %v585 = vrot.slane %v583, 1
        %v586 = vshll.u32 %v573, 16
        %v588 = vrot.slane %v586, 2
        %v589 = vor.u32 %v585, %v588
        %v591 = vshrl.u32 %v580, 16
        %v593 = vrot.slane %v591, 1
        %v594 = vshll.u32 %v580, 16
        %v596 = vrot.slane %v594, 2
        %v597 = vor.u32 %v593, %v596
        %v598 = vsel %vm581, %v589, %v597
        %v600 = vunpack.c.l.b16 %v541
        %v601 = vpack.c.b16 %v547, %v600
        %vm602 = vcmask 1045504
        %v603 = vrot.slane %v601, 2
        %v604 = vrot.slane %v580, 2
        %v605 = vsel %vm602, %v603, %v604
        %v606 = vld [vmem:[#allocation4] sm:$0xf]
        %v607 = vld [vmem:[#allocation4 + $0x4] sm:$0xf]
        %v608 = vld [vmem:[#allocation4 + $0x8] sm:$0xf]
        %v609 = vld [vmem:[#allocation4 + $0xc] sm:$0xf]
        %v610 = vld [vmem:[#allocation4 + $0x10] sm:$0xf]
        %v611 = vld [vmem:[#allocation4 + $0x14] sm:$0xf]
        %v612 = vld [vmem:[#allocation4 + $0x18] sm:$0xf]
        %v613 = vld [vmem:[#allocation4 + $0x1c] sm:$0xf]
        %v614 = vld [vmem:[#allocation4 + $0x20] sm:$0xf]
        %v615 = vld [vmem:[#allocation4 + $0x24] sm:$0xf]
        %v616 = vld [vmem:[#allocation4 + $0x28] sm:$0xf]
        %v617 = vld [vmem:[#allocation4 + $0x2c] sm:$0xf]
        %v618 = vld [vmem:[#allocation4 + $0x30] sm:$0xf]
        %v619 = vld [vmem:[#allocation4 + $0x34] sm:$0xf]
        %v620 = vld [vmem:[#allocation4 + $0x38] sm:$0xf]
        %v621 = vld [vmem:[#allocation4 + $0x3c] sm:$0xf]
        %v622 = vld [vmem:[#allocation4 + $0x40] sm:$0xf]
        %v623 = vld [vmem:[#allocation4 + $0x44] sm:$0xf]
        %v624 = vld [vmem:[#allocation4 + $0x48] sm:$0xf]
        %v625 = vld [vmem:[#allocation4 + $0x4c] sm:$0xf]
        %v626 = vld [vmem:[#allocation4 + $0x50] sm:$0xf]
        %v627 = vld [vmem:[#allocation4 + $0x54] sm:$0xf]
        %v628 = vld [vmem:[#allocation4 + $0x58] sm:$0xf]
        %v629 = vld [vmem:[#allocation4 + $0x5c] sm:$0xf]
        %v630 = vld [vmem:[#allocation4 + $0x60] sm:$0xf]
        %v631 = vld [vmem:[#allocation4 + $0x64] sm:$0xf]
        %v632 = vld [vmem:[#allocation4 + $0x68] sm:$0xf]
        %v633 = vld [vmem:[#allocation4 + $0x6c] sm:$0xf]
        %v634 = vld [vmem:[#allocation4 + $0x70] sm:$0xf]
        %v635 = vld [vmem:[#allocation4 + $0x74] sm:$0xf]
        %v636 = vld [vmem:[#allocation4 + $0x78] sm:$0xf]
        %v637 = vld [vmem:[#allocation4 + $0x7c] sm:$0xf]
        %v638 = vld [vmem:[#allocation4 + $0x80] sm:$0xf]
        %v639 = vld [vmem:[#allocation4 + $0x84] sm:$0xf]
        %v640 = vld [vmem:[#allocation4 + $0x88] sm:$0xf]
        %v641 = vld [vmem:[#allocation4 + $0x8c] sm:$0xf]
        %v642 = vld [vmem:[#allocation4 + $0x90] sm:$0xf]
        %v643 = vld [vmem:[#allocation4 + $0x94] sm:$0xf]
        %v644 = vld [vmem:[#allocation4 + $0x98] sm:$0xf]
        %v645 = vld [vmem:[#allocation4 + $0x9c] sm:$0xf]
        %v646 = vld [vmem:[#allocation4 + $0xa0] sm:$0xf]
        %v647 = vld [vmem:[#allocation4 + $0xa4] sm:$0xf]
        %v648 = vld [vmem:[#allocation4 + $0xa8] sm:$0xf]
        %v649 = vld [vmem:[#allocation4 + $0xac] sm:$0xf]
        %v650 = vld [vmem:[#allocation4 + $0xb0] sm:$0xf]
        %v651 = vld [vmem:[#allocation4 + $0xb4] sm:$0xf]
        %v652 = vld [vmem:[#allocation4 + $0xb8] sm:$0xf]
        %v653 = vld [vmem:[#allocation4 + $0xbc] sm:$0xf]
        %v654 = vld [vmem:[#allocation4 + $0xc0] sm:$0xf]
        %v655 = vld [vmem:[#allocation4 + $0xc4] sm:$0xf]
        %v656 = vld [vmem:[#allocation4 + $0xc8] sm:$0xf]
        %v657 = vld [vmem:[#allocation4 + $0xcc] sm:$0xf]
        %v658 = vld [vmem:[#allocation4 + $0xd0] sm:$0xf]
        %v659 = vld [vmem:[#allocation4 + $0xd4] sm:$0xf]
        %v660 = vld [vmem:[#allocation4 + $0xd8] sm:$0xf]
        %v661 = vld [vmem:[#allocation4 + $0xdc] sm:$0xf]
        %v662 = vld [vmem:[#allocation4 + $0xe0] sm:$0xf]
        %v663 = vld [vmem:[#allocation4 + $0xe4] sm:$0xf]
        %v664 = vld [vmem:[#allocation4 + $0xe8] sm:$0xf]
        %v665 = vld [vmem:[#allocation4 + $0xec] sm:$0xf]
        %v666 = vld [vmem:[#allocation4 + $0xf0] sm:$0xf]
        %v667 = vld [vmem:[#allocation4 + $0xf4] sm:$0xf]
        %v668 = vld [vmem:[#allocation4 + $0xf8] sm:$0xf]
        %v669 = vld [vmem:[#allocation4 + $0xfc] sm:$0xf]
        %v670 = vld [vmem:[#allocation4 + $0x100] sm:$0xf]
        %v671 = vld [vmem:[#allocation4 + $0x104] sm:$0xf]
        %v672 = vld [vmem:[#allocation4 + $0x108] sm:$0xf]
        %v673 = vld [vmem:[#allocation4 + $0x10c] sm:$0xf]
        %v674 = vld [vmem:[#allocation4 + $0x110] sm:$0xf]
        %v675 = vld [vmem:[#allocation4 + $0x114] sm:$0xf]
        %v676 = vld [vmem:[#allocation4 + $0x118] sm:$0xf]
        %v677 = vld [vmem:[#allocation4 + $0x11c] sm:$0xf]
        %v678 = vld [vmem:[#allocation4 + $0x120] sm:$0xf]
        %v679 = vld [vmem:[#allocation4 + $0x124] sm:$0xf]
        %v680 = vld [vmem:[#allocation4 + $0x128] sm:$0xf]
        %v681 = vld [vmem:[#allocation4 + $0x12c] sm:$0xf]
        %v682 = vld [vmem:[#allocation4 + $0x130] sm:$0xf]
        %v683 = vld [vmem:[#allocation4 + $0x134] sm:$0xf]
        %v684 = vld [vmem:[#allocation4 + $0x138] sm:$0xf]
        %v685 = vld [vmem:[#allocation4 + $0x13c] sm:$0xf]
        %v686 = vrot.slane %v550, 1
        %v687 = vrot.slane %v551, 1
        %v688 = vsel %vm574, %v686, %v687
        %v689 = vrot.slane %v567, 1
        %v690 = vrot.slane %v570, 1
        %v691 = vsel %vm574, %v689, %v690
        %v692 = vrot.slane %v577, 1
        %v693 = vrot.slane %v576, 1
        %v694 = vsel %vm574, %v692, %v693
        %v695 = vrot.slane %v598, 1
        %v696 = vrot.slane %v597, 1
        %v697 = vsel %vm574, %v695, %v696
        %v698 = vrot.slane %v605, 1
        %v699 = vrot.slane %v604, 1
        %v700 = vsel %vm574, %v698, %v699
        %v791 = vunpack.c.l.b16 %v606
        %v792 = vunpack.c.l.b16 %v607
        %v793 = vunpack.c.l.b16 %v608
        %v794 = vunpack.c.l.b16 %v609
        %v795 = vunpack.c.l.b16 %v610
        %v796 = vunpack.c.l.b16 %v611
        %v797 = vunpack.c.l.b16 %v612
        %v798 = vunpack.c.l.b16 %v613
        %v799 = vunpack.c.l.b16 %v614
        %v800 = vunpack.c.l.b16 %v615
        %v801 = vunpack.c.l.b16 %v616
        %v802 = vunpack.c.l.b16 %v617
        %v803 = vunpack.c.l.b16 %v618
        %v804 = vunpack.c.l.b16 %v619
        %v805 = vunpack.c.l.b16 %v620
        %v806 = vunpack.c.l.b16 %v621
        %v807 = vunpack.c.l.b16 %v622
        %v808 = vunpack.c.l.b16 %v623
        %v809 = vunpack.c.l.b16 %v624
        %v810 = vunpack.c.l.b16 %v625
        %v811 = vunpack.c.l.b16 %v626
        %v812 = vunpack.c.l.b16 %v627
        %v813 = vunpack.c.l.b16 %v628
        %v814 = vunpack.c.l.b16 %v629
        %v815 = vunpack.c.l.b16 %v630
        %v816 = vunpack.c.l.b16 %v631
        %v817 = vunpack.c.l.b16 %v632
        %v818 = vunpack.c.l.b16 %v633
        %v819 = vunpack.c.l.b16 %v634
        %v820 = vunpack.c.l.b16 %v635
        %v821 = vunpack.c.l.b16 %v636
        %v822 = vunpack.c.l.b16 %v637
        %v823 = vunpack.c.l.b16 %v638
        %v824 = vunpack.c.l.b16 %v639
        %v825 = vunpack.c.l.b16 %v640
        %v826 = vunpack.c.l.b16 %v641
        %v827 = vunpack.c.l.b16 %v642
        %v828 = vunpack.c.l.b16 %v643
        %v829 = vunpack.c.l.b16 %v644
        %v830 = vunpack.c.l.b16 %v645
        %v831 = vunpack.c.l.b16 %v646
        %v832 = vunpack.c.l.b16 %v647
        %v833 = vunpack.c.l.b16 %v648
        %v834 = vunpack.c.l.b16 %v649
        %v835 = vunpack.c.l.b16 %v650
        %v836 = vunpack.c.l.b16 %v651
        %v837 = vunpack.c.l.b16 %v652
        %v838 = vunpack.c.l.b16 %v653
        %v839 = vunpack.c.l.b16 %v654
        %v840 = vunpack.c.l.b16 %v655
        %v841 = vunpack.c.l.b16 %v656
        %v842 = vunpack.c.l.b16 %v657
        %v843 = vunpack.c.l.b16 %v658
        %v844 = vunpack.c.l.b16 %v659
        %v845 = vunpack.c.l.b16 %v660
        %v846 = vunpack.c.l.b16 %v661
        %v847 = vunpack.c.l.b16 %v662
        %v848 = vunpack.c.l.b16 %v663
        %v849 = vunpack.c.l.b16 %v664
        %v850 = vunpack.c.l.b16 %v665
        %v851 = vunpack.c.l.b16 %v666
        %v852 = vunpack.c.l.b16 %v667
        %v853 = vunpack.c.l.b16 %v668
        %v854 = vunpack.c.l.b16 %v669
        %v855 = vunpack.c.l.b16 %v670
        %v856 = vunpack.c.l.b16 %v671
        %v857 = vunpack.c.l.b16 %v672
        %v858 = vunpack.c.l.b16 %v673
        %v859 = vunpack.c.l.b16 %v674
        %v860 = vunpack.c.l.b16 %v675
        %v861 = vunpack.c.l.b16 %v676
        %v862 = vunpack.c.l.b16 %v677
        %v863 = vunpack.c.l.b16 %v678
        %v864 = vunpack.c.l.b16 %v679
        %v865 = vunpack.c.l.b16 %v680
        %v866 = vunpack.c.l.b16 %v681
        %v867 = vunpack.c.l.b16 %v682
        %v868 = vunpack.c.l.b16 %v683
        %v869 = vunpack.c.l.b16 %v684
        %v870 = vunpack.c.l.b16 %v685
        %v871 = vpack.c.b16 %v792, %v791
        %v872 = vpack.c.b16 %v794, %v793
        %v873 = vpack.c.b16 %v796, %v795
        %v874 = vpack.c.b16 %v798, %v797
        %v875 = vpack.c.b16 %v800, %v799
        %v876 = vpack.c.b16 %v802, %v801
        %v877 = vpack.c.b16 %v804, %v803
        %v878 = vpack.c.b16 %v806, %v805
        %v879 = vpack.c.b16 %v808, %v807
        %v880 = vpack.c.b16 %v810, %v809
        %v881 = vpack.c.b16 %v812, %v811
        %v882 = vpack.c.b16 %v814, %v813
        %v883 = vpack.c.b16 %v816, %v815
        %v884 = vpack.c.b16 %v818, %v817
        %v885 = vpack.c.b16 %v820, %v819
        %v886 = vpack.c.b16 %v822, %v821
        %v887 = vpack.c.b16 %v824, %v823
        %v888 = vpack.c.b16 %v826, %v825
        %v889 = vpack.c.b16 %v828, %v827
        %v890 = vpack.c.b16 %v830, %v829
        %v891 = vpack.c.b16 %v832, %v831
        %v892 = vpack.c.b16 %v834, %v833
        %v893 = vpack.c.b16 %v836, %v835
        %v894 = vpack.c.b16 %v838, %v837
        %v895 = vpack.c.b16 %v840, %v839
        %v896 = vpack.c.b16 %v842, %v841
        %v897 = vpack.c.b16 %v844, %v843
        %v898 = vpack.c.b16 %v846, %v845
        %v899 = vpack.c.b16 %v848, %v847
        %v900 = vpack.c.b16 %v850, %v849
        %v901 = vpack.c.b16 %v852, %v851
        %v902 = vpack.c.b16 %v854, %v853
        %v903 = vpack.c.b16 %v856, %v855
        %v904 = vpack.c.b16 %v858, %v857
        %v905 = vpack.c.b16 %v860, %v859
        %v906 = vpack.c.b16 %v862, %v861
        %v907 = vpack.c.b16 %v864, %v863
        %v908 = vpack.c.b16 %v866, %v865
        %v909 = vpack.c.b16 %v868, %v867
        %v910 = vpack.c.b16 %v870, %v869
        %951 = vmatprep.subr.bf16.mxu0 0
        %952 = vmatpush1.bf16.msra.mxu0 %v878
        %953 = vmatprep.subr.bf16.mxu0 0
        %954 = vmatpush1.bf16.msra.mxu0 %v877
        %955 = vmatprep.subr.bf16.mxu0 0
        %956 = vmatpush1.bf16.msra.mxu0 %v876
        %957 = vmatprep.subr.bf16.mxu0 0
        %958 = vmatpush1.bf16.msra.mxu0 %v875
        %959 = vmatprep.subr.bf16.mxu0 0
        %960 = vmatpush1.bf16.msra.mxu0 %v874
        %961 = vmatprep.subr.bf16.mxu0 0
        %962 = vmatpush1.bf16.msra.mxu0 %v873
        %963 = vmatprep.subr.bf16.mxu0 0
        %964 = vmatpush1.bf16.msra.mxu0 %v872
        %965 = vmatprep.subr.bf16.mxu0 0
        %966 = vmatpush1.bf16.msra.mxu0 %v871
        %967 = vmatprep.subr.bf16.mxu0 0
        %968 = vmatpush2.bf16.msra.mxu0 %v886
        %969 = vmatprep.subr.bf16.mxu0 0
        %970 = vmatpush2.bf16.msra.mxu0 %v885
        %971 = vmatprep.subr.bf16.mxu0 0
        %972 = vmatpush2.bf16.msra.mxu0 %v884
        %973 = vmatprep.subr.bf16.mxu0 0
        %974 = vmatpush2.bf16.msra.mxu0 %v883
        %975 = vmatprep.subr.bf16.mxu0 0
        %976 = vmatpush2.bf16.msra.mxu0 %v882
        %977 = vmatprep.subr.bf16.mxu0 0
        %978 = vmatpush2.bf16.msra.mxu0 %v881
        %979 = vmatprep.subr.bf16.mxu0 0
        %980 = vmatpush2.bf16.msra.mxu0 %v880
        %981 = vmatprep.subr.bf16.mxu0 0
        %982 = vmatpush2.bf16.msra.mxu0 %v879
        %983 = vmatprep.mubr.bf16.mxu0 %v691
        %984 = vmatmul.mubr.bf16.gmra.mxu0 %v688
        %v985 = vpop.f32.mrf.mxu0
        %v986 = vadd.f32 0.0, %v985
        %v987 = vpop.f32.mrf.mxu0
        %v988 = vpop.f32.mrf.mxu0
        %v989 = vadd.f32 0.0, %v988
        %v990 = vpop.f32.mrf.mxu0
        %991 = vmatprep.mubr.bf16.mxu0 %v690
        %992 = vmatmul.mubr.bf16.gmra.mxu0 %v687
        %v993 = vpop.f32.mrf.mxu0
        %v994 = vadd.f32 0.0, %v993
        %v995 = vpop.f32.mrf.mxu0
        %v996 = vpop.f32.mrf.mxu0
        %v997 = vpop.f32.mrf.mxu0
        %998 = vdwg.mxu0
        %999 = vmatprep.subr.bf16.mxu0 0
        %1000 = vmatpush1.bf16.msra.mxu0 %v894
        %1001 = vmatprep.subr.bf16.mxu0 0
        %1002 = vmatpush1.bf16.msra.mxu0 %v893
        %1003 = vmatprep.subr.bf16.mxu0 0
        %1004 = vmatpush1.bf16.msra.mxu0 %v892
        %1005 = vmatprep.subr.bf16.mxu0 0
        %1006 = vmatpush1.bf16.msra.mxu0 %v891
        %1007 = vmatprep.subr.bf16.mxu0 0
        %1008 = vmatpush1.bf16.msra.mxu0 %v890
        %1009 = vmatprep.subr.bf16.mxu0 0
        %1010 = vmatpush1.bf16.msra.mxu0 %v889
        %1011 = vmatprep.subr.bf16.mxu0 0
        %1012 = vmatpush1.bf16.msra.mxu0 %v888
        %1013 = vmatprep.subr.bf16.mxu0 0
        %1014 = vmatpush1.bf16.msra.mxu0 %v887
        %1015 = vmatprep.subr.bf16.mxu0 0
        %1016 = vmatpush2.bf16.msra.mxu0 %v902
        %1017 = vmatprep.subr.bf16.mxu0 0
        %1018 = vmatpush2.bf16.msra.mxu0 %v901
        %1019 = vmatprep.subr.bf16.mxu0 0
        %1020 = vmatpush2.bf16.msra.mxu0 %v900
        %1021 = vmatprep.subr.bf16.mxu0 0
        %1022 = vmatpush2.bf16.msra.mxu0 %v899
        %1023 = vmatprep.subr.bf16.mxu0 0
        %1024 = vmatpush2.bf16.msra.mxu0 %v898
        %1025 = vmatprep.subr.bf16.mxu0 0
        %1026 = vmatpush2.bf16.msra.mxu0 %v897
        %1027 = vmatprep.subr.bf16.mxu0 0
        %1028 = vmatpush2.bf16.msra.mxu0 %v896
        %1029 = vmatprep.subr.bf16.mxu0 0
        %1030 = vmatpush2.bf16.msra.mxu0 %v895
        %1031 = vmatprep.mubr.bf16.mxu0 %v697
        %1032 = vmatmul.mubr.bf16.gmra.mxu0 %v694
        %v1033 = vpop.f32.mrf.mxu0
        %v1034 = vadd.f32 %v986, %v1033
        %v1035 = vpop.f32.mrf.mxu0
        %v1036 = vpop.f32.mrf.mxu0
        %v1037 = vadd.f32 %v989, %v1036
        %v1038 = vpop.f32.mrf.mxu0
        %1039 = vmatprep.mubr.bf16.mxu0 %v696
        %1040 = vmatmul.mubr.bf16.gmra.mxu0 %v693
        %v1041 = vpop.f32.mrf.mxu0
        %v1042 = vadd.f32 %v994, %v1041
        %v1043 = vpop.f32.mrf.mxu0
        %v1044 = vpop.f32.mrf.mxu0
        %v1045 = vpop.f32.mrf.mxu0
        %1046 = vdwg.mxu0
        %1047 = vmatprep.subr.bf16.mxu0 0
        %1048 = vmatpush1.bf16.msra.mxu0 %v910
        %1049 = vmatprep.subr.bf16.mxu0 0
        %1050 = vmatpush1.bf16.msra.mxu0 %v909
        %1051 = vmatprep.subr.bf16.mxu0 0
        %1052 = vmatpush1.bf16.msra.mxu0 %v908
        %1053 = vmatprep.subr.bf16.mxu0 0
        %1054 = vmatpush1.bf16.msra.mxu0 %v907
        %1055 = vmatprep.subr.bf16.mxu0 0
        %1056 = vmatpush1.bf16.msra.mxu0 %v906
        %1057 = vmatprep.subr.bf16.mxu0 0
        %1058 = vmatpush1.bf16.msra.mxu0 %v905
        %1059 = vmatprep.subr.bf16.mxu0 0
        %1060 = vmatpush1.bf16.msra.mxu0 %v904
        %1061 = vmatprep.subr.bf16.mxu0 0
        %1062 = vmatpush1.bf16.msra.mxu0 %v903
        %1063 = vmatprep.subr.bf16.mxu0 0
        %1064 = vmatpush2.bf16.msra.mxu0 0
        %1065 = vmatprep.subr.bf16.mxu0 0
        %1066 = vmatpush2.bf16.msra.mxu0 0
        %1067 = vmatprep.subr.bf16.mxu0 0
        %1068 = vmatpush2.bf16.msra.mxu0 0
        %1069 = vmatprep.subr.bf16.mxu0 0
        %1070 = vmatpush2.bf16.msra.mxu0 0
        %1071 = vmatprep.subr.bf16.mxu0 0
        %1072 = vmatpush2.bf16.msra.mxu0 0
        %1073 = vmatprep.subr.bf16.mxu0 0
        %1074 = vmatpush2.bf16.msra.mxu0 0
        %1075 = vmatprep.subr.bf16.mxu0 0
        %1076 = vmatpush2.bf16.msra.mxu0 0
        %1077 = vmatprep.subr.bf16.mxu0 0
        %1078 = vmatpush2.bf16.msra.mxu0 0
        %1079 = vmatprep.mubr.bf16.mxu0 0
        %1080 = vmatmul.mubr.bf16.gmra.mxu0 %v700
        %v1081 = vpop.f32.mrf.mxu0
        %v1082 = vadd.f32 %v1034, %v1081
        %v1083 = vpop.f32.mrf.mxu0
        %v1084 = vpop.f32.mrf.mxu0
        %v1085 = vadd.f32 %v1037, %v1084
        %v1086 = vpop.f32.mrf.mxu0
        %1087 = vmatprep.mubr.bf16.mxu0 0
        %1088 = vmatmul.mubr.bf16.gmra.mxu0 %v699
        %v1089 = vpop.f32.mrf.mxu0
        %v1090 = vadd.f32 %v1042, %v1089
        %v1091 = vpop.f32.mrf.mxu0
        %v1092 = vpop.f32.mrf.mxu0
        %v1093 = vpop.f32.mrf.mxu0
        %1094 = vdwg.mxu0
        %v1095 = vld [vmem:[%s2] sm:$0x1]
        %v1097 = vlaneseq
        %v1098 = vshrl.u32 %v1097, 7
        %v1099 = vsub.s32 0, %v1098
        %v1100 = vrot.slane %v1095, %v1099
        %v1102 = vmul.f32 %v1082, %v1100
        %v1103 = vmul.f32 %v1085, %v1100
        %v1104 = vmul.f32 %v1090, %v1100
        %v1105 = vld [vmem:[%s3] sm:$0x1]
        %v1107 = vlaneseq
        %v1108 = vshrl.u32 %v1107, 7
        %v1109 = vsub.s32 0, %v1108
        %v1110 = vrot.slane %v1105, %v1109
        %v1112 = vadd.f32 %v1102, %v1110
        %v1113 = vadd.f32 %v1103, %v1110
        %v1114 = vadd.f32 %v1104, %v1110
        %v1115 = vmax.f32 %v1112, 0.0
        %v1116 = vmax.f32 %v1113, 0.0
        %v1117 = vmax.f32 %v1114, 0.0
        %v1118 = vsel %vm531, 1, 0
        %v1119 = vsel %vm532, 1, 0
        %v1120 = vsel %vm533, 1, 0
        %vm1121 = vcmp.eq.s32.totalorder %v1118, 1
        %vm1122 = vcmp.eq.s32.totalorder %v1119, 1
        %vm1123 = vcmp.eq.s32.totalorder %v1120, 1
        %v1124 = vsel %vm1121, %v1115, 0.0
        %v1125 = vsel %vm1122, %v1116, 0.0
        %v1126 = vsel %vm1123, %v1117, 0.0
        %v1127 = vpack.c.bf16 %v1125, %v1124
        %v1128 = vpack.c.bf16 %v1126, %v1126
        %v1130 = vshrl.u32 %v1127, 16
        %v1132 = vshll.u32 %v1127, 16
        %v1134 = vrot.slane %v1132, 1
        %v1135 = vor.u32 %v1130, %v1134
        %v1137 = vshll.u32 %v1128, 16
        %v1139 = vrot.slane %v1137, 1
        %v1140 = vsel %vm555, %v1135, %v1139
        %v1141 = vshrl.u32 %v1128, 16
        %v1143 = vor.u32 %v1141, %v1139
        %v1148 = vrot.slane %v1127, 1
        %v1149 = vrot.slane %v1128, 1
        %v1150 = vsel %vm574, %v1148, %v1149
        %v1153 = vrot.slane %v1130, 1
        %v1154 = vrot.slane %v1132, 2
        %v1155 = vor.u32 %v1153, %v1154
        %v1156 = vrot.slane %v1141, 1
        %v1157 = vrot.slane %v1137, 2
        %v1158 = vor.u32 %v1156, %v1157
        %v1159 = vsel %vm581, %v1155, %v1158
        %v1162 = vrot.slane %v1127, 2
        %v1163 = vrot.slane %v1128, 2
        %v1164 = vsel %vm602, %v1162, %v1163
        %v1167 = vld [vmem:[#allocation7] sm:$0xf]
        %v1168 = vld [vmem:[#allocation7 + $0x4] sm:$0xf]
        %v1169 = vld [vmem:[#allocation7 + $0x8] sm:$0xf]
        %v1170 = vld [vmem:[#allocation7 + $0xc] sm:$0xf]
        %v1171 = vld [vmem:[#allocation7 + $0x10] sm:$0xf]
        %v1172 = vld [vmem:[#allocation7 + $0x14] sm:$0xf]
        %v1173 = vld [vmem:[#allocation7 + $0x18] sm:$0xf]
        %v1174 = vld [vmem:[#allocation7 + $0x1c] sm:$0xf]
        %v1175 = vld [vmem:[#allocation7 + $0x20] sm:$0xf]
        %v1176 = vld [vmem:[#allocation7 + $0x24] sm:$0xf]
        %v1177 = vld [vmem:[#allocation7 + $0x28] sm:$0xf]
        %v1178 = vld [vmem:[#allocation7 + $0x2c] sm:$0xf]
        %v1179 = vld [vmem:[#allocation7 + $0x30] sm:$0xf]
        %v1180 = vld [vmem:[#allocation7 + $0x34] sm:$0xf]
        %v1181 = vld [vmem:[#allocation7 + $0x38] sm:$0xf]
        %v1182 = vld [vmem:[#allocation7 + $0x3c] sm:$0xf]
        %v1183 = vld [vmem:[#allocation7 + $0x40] sm:$0xf]
        %v1184 = vld [vmem:[#allocation7 + $0x44] sm:$0xf]
        %v1185 = vld [vmem:[#allocation7 + $0x48] sm:$0xf]
        %v1186 = vld [vmem:[#allocation7 + $0x4c] sm:$0xf]
        %v1187 = vld [vmem:[#allocation7 + $0x50] sm:$0xf]
        %v1188 = vld [vmem:[#allocation7 + $0x54] sm:$0xf]
        %v1189 = vld [vmem:[#allocation7 + $0x58] sm:$0xf]
        %v1190 = vld [vmem:[#allocation7 + $0x5c] sm:$0xf]
        %v1191 = vld [vmem:[#allocation7 + $0x60] sm:$0xf]
        %v1192 = vld [vmem:[#allocation7 + $0x64] sm:$0xf]
        %v1193 = vld [vmem:[#allocation7 + $0x68] sm:$0xf]
        %v1194 = vld [vmem:[#allocation7 + $0x6c] sm:$0xf]
        %v1195 = vld [vmem:[#allocation7 + $0x70] sm:$0xf]
        %v1196 = vld [vmem:[#allocation7 + $0x74] sm:$0xf]
        %v1197 = vld [vmem:[#allocation7 + $0x78] sm:$0xf]
        %v1198 = vld [vmem:[#allocation7 + $0x7c] sm:$0xf]
        %v1199 = vld [vmem:[#allocation7 + $0x80] sm:$0xf]
        %v1200 = vld [vmem:[#allocation7 + $0x84] sm:$0xf]
        %v1201 = vld [vmem:[#allocation7 + $0x88] sm:$0xf]
        %v1202 = vld [vmem:[#allocation7 + $0x8c] sm:$0xf]
        %v1203 = vld [vmem:[#allocation7 + $0x90] sm:$0xf]
        %v1204 = vld [vmem:[#allocation7 + $0x94] sm:$0xf]
        %v1205 = vld [vmem:[#allocation7 + $0x98] sm:$0xf]
        %v1206 = vld [vmem:[#allocation7 + $0x9c] sm:$0xf]
        %v1207 = vld [vmem:[#allocation7 + $0xa0] sm:$0xf]
        %v1208 = vld [vmem:[#allocation7 + $0xa4] sm:$0xf]
        %v1209 = vld [vmem:[#allocation7 + $0xa8] sm:$0xf]
        %v1210 = vld [vmem:[#allocation7 + $0xac] sm:$0xf]
        %v1211 = vld [vmem:[#allocation7 + $0xb0] sm:$0xf]
        %v1212 = vld [vmem:[#allocation7 + $0xb4] sm:$0xf]
        %v1213 = vld [vmem:[#allocation7 + $0xb8] sm:$0xf]
        %v1214 = vld [vmem:[#allocation7 + $0xbc] sm:$0xf]
        %v1215 = vld [vmem:[#allocation7 + $0xc0] sm:$0xf]
        %v1216 = vld [vmem:[#allocation7 + $0xc4] sm:$0xf]
        %v1217 = vld [vmem:[#allocation7 + $0xc8] sm:$0xf]
        %v1218 = vld [vmem:[#allocation7 + $0xcc] sm:$0xf]
        %v1219 = vld [vmem:[#allocation7 + $0xd0] sm:$0xf]
        %v1220 = vld [vmem:[#allocation7 + $0xd4] sm:$0xf]
        %v1221 = vld [vmem:[#allocation7 + $0xd8] sm:$0xf]
        %v1222 = vld [vmem:[#allocation7 + $0xdc] sm:$0xf]
        %v1223 = vld [vmem:[#allocation7 + $0xe0] sm:$0xf]
        %v1224 = vld [vmem:[#allocation7 + $0xe4] sm:$0xf]
        %v1225 = vld [vmem:[#allocation7 + $0xe8] sm:$0xf]
        %v1226 = vld [vmem:[#allocation7 + $0xec] sm:$0xf]
        %v1227 = vld [vmem:[#allocation7 + $0xf0] sm:$0xf]
        %v1228 = vld [vmem:[#allocation7 + $0xf4] sm:$0xf]
        %v1229 = vld [vmem:[#allocation7 + $0xf8] sm:$0xf]
        %v1230 = vld [vmem:[#allocation7 + $0xfc] sm:$0xf]
        %v1231 = vld [vmem:[#allocation7 + $0x100] sm:$0xf]
        %v1232 = vld [vmem:[#allocation7 + $0x104] sm:$0xf]
        %v1233 = vld [vmem:[#allocation7 + $0x108] sm:$0xf]
        %v1234 = vld [vmem:[#allocation7 + $0x10c] sm:$0xf]
        %v1235 = vld [vmem:[#allocation7 + $0x110] sm:$0xf]
        %v1236 = vld [vmem:[#allocation7 + $0x114] sm:$0xf]
        %v1237 = vld [vmem:[#allocation7 + $0x118] sm:$0xf]
        %v1238 = vld [vmem:[#allocation7 + $0x11c] sm:$0xf]
        %v1239 = vld [vmem:[#allocation7 + $0x120] sm:$0xf]
        %v1240 = vld [vmem:[#allocation7 + $0x124] sm:$0xf]
        %v1241 = vld [vmem:[#allocation7 + $0x128] sm:$0xf]
        %v1242 = vld [vmem:[#allocation7 + $0x12c] sm:$0xf]
        %v1243 = vld [vmem:[#allocation7 + $0x130] sm:$0xf]
        %v1244 = vld [vmem:[#allocation7 + $0x134] sm:$0xf]
        %v1245 = vld [vmem:[#allocation7 + $0x138] sm:$0xf]
        %v1246 = vld [vmem:[#allocation7 + $0x13c] sm:$0xf]
        %v1327 = vunpack.c.l.b16 %v1167
        %v1328 = vunpack.c.l.b16 %v1168
        %v1329 = vunpack.c.l.b16 %v1169
        %v1330 = vunpack.c.l.b16 %v1170
        %v1331 = vunpack.c.l.b16 %v1171
        %v1332 = vunpack.c.l.b16 %v1172
        %v1333 = vunpack.c.l.b16 %v1173
        %v1334 = vunpack.c.l.b16 %v1174
        %v1335 = vunpack.c.l.b16 %v1175
        %v1336 = vunpack.c.l.b16 %v1176
        %v1337 = vunpack.c.l.b16 %v1177
        %v1338 = vunpack.c.l.b16 %v1178
        %v1339 = vunpack.c.l.b16 %v1179
        %v1340 = vunpack.c.l.b16 %v1180
        %v1341 = vunpack.c.l.b16 %v1181
        %v1342 = vunpack.c.l.b16 %v1182
        %v1343 = vunpack.c.l.b16 %v1183
        %v1344 = vunpack.c.l.b16 %v1184
        %v1345 = vunpack.c.l.b16 %v1185
        %v1346 = vunpack.c.l.b16 %v1186
        %v1347 = vunpack.c.l.b16 %v1187
        %v1348 = vunpack.c.l.b16 %v1188
        %v1349 = vunpack.c.l.b16 %v1189
        %v1350 = vunpack.c.l.b16 %v1190
        %v1351 = vunpack.c.l.b16 %v1191
        %v1352 = vunpack.c.l.b16 %v1192
        %v1353 = vunpack.c.l.b16 %v1193
        %v1354 = vunpack.c.l.b16 %v1194
        %v1355 = vunpack.c.l.b16 %v1195
        %v1356 = vunpack.c.l.b16 %v1196
        %v1357 = vunpack.c.l.b16 %v1197
        %v1358 = vunpack.c.l.b16 %v1198
        %v1359 = vunpack.c.l.b16 %v1199
        %v1360 = vunpack.c.l.b16 %v1200
        %v1361 = vunpack.c.l.b16 %v1201
        %v1362 = vunpack.c.l.b16 %v1202
        %v1363 = vunpack.c.l.b16 %v1203
        %v1364 = vunpack.c.l.b16 %v1204
        %v1365 = vunpack.c.l.b16 %v1205
        %v1366 = vunpack.c.l.b16 %v1206
        %v1367 = vunpack.c.l.b16 %v1207
        %v1368 = vunpack.c.l.b16 %v1208
        %v1369 = vunpack.c.l.b16 %v1209
        %v1370 = vunpack.c.l.b16 %v1210
        %v1371 = vunpack.c.l.b16 %v1211
        %v1372 = vunpack.c.l.b16 %v1212
        %v1373 = vunpack.c.l.b16 %v1213
        %v1374 = vunpack.c.l.b16 %v1214
        %v1375 = vunpack.c.l.b16 %v1215
        %v1376 = vunpack.c.l.b16 %v1216
        %v1377 = vunpack.c.l.b16 %v1217
        %v1378 = vunpack.c.l.b16 %v1218
        %v1379 = vunpack.c.l.b16 %v1219
        %v1380 = vunpack.c.l.b16 %v1220
        %v1381 = vunpack.c.l.b16 %v1221
        %v1382 = vunpack.c.l.b16 %v1222
        %v1383 = vunpack.c.l.b16 %v1223
        %v1384 = vunpack.c.l.b16 %v1224
        %v1385 = vunpack.c.l.b16 %v1225
        %v1386 = vunpack.c.l.b16 %v1226
        %v1387 = vunpack.c.l.b16 %v1227
        %v1388 = vunpack.c.l.b16 %v1228
        %v1389 = vunpack.c.l.b16 %v1229
        %v1390 = vunpack.c.l.b16 %v1230
        %v1391 = vunpack.c.l.b16 %v1231
        %v1392 = vunpack.c.l.b16 %v1232
        %v1393 = vunpack.c.l.b16 %v1233
        %v1394 = vunpack.c.l.b16 %v1234
        %v1395 = vunpack.c.l.b16 %v1235
        %v1396 = vunpack.c.l.b16 %v1236
        %v1397 = vunpack.c.l.b16 %v1237
        %v1398 = vunpack.c.l.b16 %v1238
        %v1399 = vunpack.c.l.b16 %v1239
        %v1400 = vunpack.c.l.b16 %v1240
        %v1401 = vunpack.c.l.b16 %v1241
        %v1402 = vunpack.c.l.b16 %v1242
        %v1403 = vunpack.c.l.b16 %v1243
        %v1404 = vunpack.c.l.b16 %v1244
        %v1405 = vunpack.c.l.b16 %v1245
        %v1406 = vunpack.c.l.b16 %v1246
        %v1407 = vpack.c.b16 %v1328, %v1327
        %v1408 = vpack.c.b16 %v1330, %v1329
        %v1409 = vpack.c.b16 %v1332, %v1331
        %v1410 = vpack.c.b16 %v1334, %v1333
        %v1411 = vpack.c.b16 %v1336, %v1335
        %v1412 = vpack.c.b16 %v1338, %v1337
        %v1413 = vpack.c.b16 %v1340, %v1339
        %v1414 = vpack.c.b16 %v1342, %v1341
        %v1415 = vpack.c.b16 %v1344, %v1343
        %v1416 = vpack.c.b16 %v1346, %v1345
        %v1417 = vpack.c.b16 %v1348, %v1347
        %v1418 = vpack.c.b16 %v1350, %v1349
        %v1419 = vpack.c.b16 %v1352, %v1351
        %v1420 = vpack.c.b16 %v1354, %v1353
        %v1421 = vpack.c.b16 %v1356, %v1355
        %v1422 = vpack.c.b16 %v1358, %v1357
        %v1423 = vpack.c.b16 %v1360, %v1359
        %v1424 = vpack.c.b16 %v1362, %v1361
        %v1425 = vpack.c.b16 %v1364, %v1363
        %v1426 = vpack.c.b16 %v1366, %v1365
        %v1427 = vpack.c.b16 %v1368, %v1367
        %v1428 = vpack.c.b16 %v1370, %v1369
        %v1429 = vpack.c.b16 %v1372, %v1371
        %v1430 = vpack.c.b16 %v1374, %v1373
        %v1431 = vpack.c.b16 %v1376, %v1375
        %v1432 = vpack.c.b16 %v1378, %v1377
        %v1433 = vpack.c.b16 %v1380, %v1379
        %v1434 = vpack.c.b16 %v1382, %v1381
        %v1435 = vpack.c.b16 %v1384, %v1383
        %v1436 = vpack.c.b16 %v1386, %v1385
        %v1437 = vpack.c.b16 %v1388, %v1387
        %v1438 = vpack.c.b16 %v1390, %v1389
        %v1439 = vpack.c.b16 %v1392, %v1391
        %v1440 = vpack.c.b16 %v1394, %v1393
        %v1441 = vpack.c.b16 %v1396, %v1395
        %v1442 = vpack.c.b16 %v1398, %v1397
        %v1443 = vpack.c.b16 %v1400, %v1399
        %v1444 = vpack.c.b16 %v1402, %v1401
        %v1445 = vpack.c.b16 %v1404, %v1403
        %v1446 = vpack.c.b16 %v1406, %v1405
        %1487 = vmatprep.subr.bf16.mxu0 0
        %1488 = vmatpush1.bf16.msra.mxu0 %v1414
        %1489 = vmatprep.subr.bf16.mxu0 0
        %1490 = vmatpush1.bf16.msra.mxu0 %v1413
        %1491 = vmatprep.subr.bf16.mxu0 0
        %1492 = vmatpush1.bf16.msra.mxu0 %v1412
        %1493 = vmatprep.subr.bf16.mxu0 0
        %1494 = vmatpush1.bf16.msra.mxu0 %v1411
        %1495 = vmatprep.subr.bf16.mxu0 0
        %1496 = vmatpush1.bf16.msra.mxu0 %v1410
        %1497 = vmatprep.subr.bf16.mxu0 0
        %1498 = vmatpush1.bf16.msra.mxu0 %v1409
        %1499 = vmatprep.subr.bf16.mxu0 0
        %1500 = vmatpush1.bf16.msra.mxu0 %v1408
        %1501 = vmatprep.subr.bf16.mxu0 0
        %1502 = vmatpush1.bf16.msra.mxu0 %v1407
        %1503 = vmatprep.subr.bf16.mxu0 0
        %1504 = vmatpush2.bf16.msra.mxu0 %v1422
        %1505 = vmatprep.subr.bf16.mxu0 0
        %1506 = vmatpush2.bf16.msra.mxu0 %v1421
        %1507 = vmatprep.subr.bf16.mxu0 0
        %1508 = vmatpush2.bf16.msra.mxu0 %v1420
        %1509 = vmatprep.subr.bf16.mxu0 0
        %1510 = vmatpush2.bf16.msra.mxu0 %v1419
        %1511 = vmatprep.subr.bf16.mxu0 0
        %1512 = vmatpush2.bf16.msra.mxu0 %v1418
        %1513 = vmatprep.subr.bf16.mxu0 0
        %1514 = vmatpush2.bf16.msra.mxu0 %v1417
        %1515 = vmatprep.subr.bf16.mxu0 0
        %1516 = vmatpush2.bf16.msra.mxu0 %v1416
        %1517 = vmatprep.subr.bf16.mxu0 0
        %1518 = vmatpush2.bf16.msra.mxu0 %v1415
        %1519 = vmatprep.mubr.bf16.mxu0 %v1140
        %1520 = vmatmul.mubr.bf16.gmra.mxu0 %v1127
        %v1521 = vpop.f32.mrf.mxu0
        %v1522 = vadd.f32 0.0, %v1521
        %v1523 = vpop.f32.mrf.mxu0
        %v1524 = vpop.f32.mrf.mxu0
        %v1525 = vadd.f32 0.0, %v1524
        %v1526 = vpop.f32.mrf.mxu0
        %1527 = vmatprep.mubr.bf16.mxu0 %v1143
        %1528 = vmatmul.mubr.bf16.gmra.mxu0 %v1128
        %v1529 = vpop.f32.mrf.mxu0
        %v1530 = vadd.f32 0.0, %v1529
        %v1531 = vpop.f32.mrf.mxu0
        %v1532 = vpop.f32.mrf.mxu0
        %v1533 = vpop.f32.mrf.mxu0
        %1534 = vdwg.mxu0
        %1535 = vmatprep.subr.bf16.mxu0 0
        %1536 = vmatpush1.bf16.msra.mxu0 %v1430
        %1537 = vmatprep.subr.bf16.mxu0 0
        %1538 = vmatpush1.bf16.msra.mxu0 %v1429
        %1539 = vmatprep.subr.bf16.mxu0 0
        %1540 = vmatpush1.bf16.msra.mxu0 %v1428
        %1541 = vmatprep.subr.bf16.mxu0 0
        %1542 = vmatpush1.bf16.msra.mxu0 %v1427
        %1543 = vmatprep.subr.bf16.mxu0 0
        %1544 = vmatpush1.bf16.msra.mxu0 %v1426
        %1545 = vmatprep.subr.bf16.mxu0 0
        %1546 = vmatpush1.bf16.msra.mxu0 %v1425
        %1547 = vmatprep.subr.bf16.mxu0 0
        %1548 = vmatpush1.bf16.msra.mxu0 %v1424
        %1549 = vmatprep.subr.bf16.mxu0 0
        %1550 = vmatpush1.bf16.msra.mxu0 %v1423
        %1551 = vmatprep.subr.bf16.mxu0 0
        %1552 = vmatpush2.bf16.msra.mxu0 %v1438
        %1553 = vmatprep.subr.bf16.mxu0 0
        %1554 = vmatpush2.bf16.msra.mxu0 %v1437
        %1555 = vmatprep.subr.bf16.mxu0 0
        %1556 = vmatpush2.bf16.msra.mxu0 %v1436
        %1557 = vmatprep.subr.bf16.mxu0 0
        %1558 = vmatpush2.bf16.msra.mxu0 %v1435
        %1559 = vmatprep.subr.bf16.mxu0 0
        %1560 = vmatpush2.bf16.msra.mxu0 %v1434
        %1561 = vmatprep.subr.bf16.mxu0 0
        %1562 = vmatpush2.bf16.msra.mxu0 %v1433
        %1563 = vmatprep.subr.bf16.mxu0 0
        %1564 = vmatpush2.bf16.msra.mxu0 %v1432
        %1565 = vmatprep.subr.bf16.mxu0 0
        %1566 = vmatpush2.bf16.msra.mxu0 %v1431
        %1567 = vmatprep.mubr.bf16.mxu0 %v1159
        %1568 = vmatmul.mubr.bf16.gmra.mxu0 %v1150
        %v1569 = vpop.f32.mrf.mxu0
        %v1570 = vadd.f32 %v1522, %v1569
        %v1571 = vpop.f32.mrf.mxu0
        %v1572 = vpop.f32.mrf.mxu0
        %v1573 = vadd.f32 %v1525, %v1572
        %v1574 = vpop.f32.mrf.mxu0
        %1575 = vmatprep.mubr.bf16.mxu0 %v1158
        %1576 = vmatmul.mubr.bf16.gmra.mxu0 %v1149
        %v1577 = vpop.f32.mrf.mxu0
        %v1578 = vadd.f32 %v1530, %v1577
        %v1579 = vpop.f32.mrf.mxu0
        %v1580 = vpop.f32.mrf.mxu0
        %v1581 = vpop.f32.mrf.mxu0
        %1582 = vdwg.mxu0
        %1583 = vmatprep.subr.bf16.mxu0 0
        %1584 = vmatpush1.bf16.msra.mxu0 %v1446
        %1585 = vmatprep.subr.bf16.mxu0 0
        %1586 = vmatpush1.bf16.msra.mxu0 %v1445
        %1587 = vmatprep.subr.bf16.mxu0 0
        %1588 = vmatpush1.bf16.msra.mxu0 %v1444
        %1589 = vmatprep.subr.bf16.mxu0 0
        %1590 = vmatpush1.bf16.msra.mxu0 %v1443
        %1591 = vmatprep.subr.bf16.mxu0 0
        %1592 = vmatpush1.bf16.msra.mxu0 %v1442
        %1593 = vmatprep.subr.bf16.mxu0 0
        %1594 = vmatpush1.bf16.msra.mxu0 %v1441
        %1595 = vmatprep.subr.bf16.mxu0 0
        %1596 = vmatpush1.bf16.msra.mxu0 %v1440
        %1597 = vmatprep.subr.bf16.mxu0 0
        %1598 = vmatpush1.bf16.msra.mxu0 %v1439
        %1599 = vmatprep.subr.bf16.mxu0 0
        %1600 = vmatpush2.bf16.msra.mxu0 0
        %1601 = vmatprep.subr.bf16.mxu0 0
        %1602 = vmatpush2.bf16.msra.mxu0 0
        %1603 = vmatprep.subr.bf16.mxu0 0
        %1604 = vmatpush2.bf16.msra.mxu0 0
        %1605 = vmatprep.subr.bf16.mxu0 0
        %1606 = vmatpush2.bf16.msra.mxu0 0
        %1607 = vmatprep.subr.bf16.mxu0 0
        %1608 = vmatpush2.bf16.msra.mxu0 0
        %1609 = vmatprep.subr.bf16.mxu0 0
        %1610 = vmatpush2.bf16.msra.mxu0 0
        %1611 = vmatprep.subr.bf16.mxu0 0
        %1612 = vmatpush2.bf16.msra.mxu0 0
        %1613 = vmatprep.subr.bf16.mxu0 0
        %1614 = vmatpush2.bf16.msra.mxu0 0
        %1615 = vmatprep.mubr.bf16.mxu0 0
        %1616 = vmatmul.mubr.bf16.gmra.mxu0 %v1164
        %v1617 = vpop.f32.mrf.mxu0
        %v1618 = vadd.f32 %v1570, %v1617
        %v1619 = vpop.f32.mrf.mxu0
        %v1620 = vpop.f32.mrf.mxu0
        %v1621 = vadd.f32 %v1573, %v1620
        %v1622 = vpop.f32.mrf.mxu0
        %1623 = vmatprep.mubr.bf16.mxu0 0
        %1624 = vmatmul.mubr.bf16.gmra.mxu0 %v1163
        %v1625 = vpop.f32.mrf.mxu0
        %v1626 = vadd.f32 %v1578, %v1625
        %v1627 = vpop.f32.mrf.mxu0
        %v1628 = vpop.f32.mrf.mxu0
        %v1629 = vpop.f32.mrf.mxu0
        %1630 = vdwg.mxu0
        %v1631 = vld [vmem:[%s5] sm:$0x1]
        %v1633 = vlaneseq
        %v1634 = vshrl.u32 %v1633, 7
        %v1635 = vsub.s32 0, %v1634
        %v1636 = vrot.slane %v1631, %v1635
        %v1638 = vmul.f32 %v1618, %v1636
        %v1639 = vmul.f32 %v1621, %v1636
        %v1640 = vmul.f32 %v1626, %v1636
        %v1641 = vld [vmem:[%s6] sm:$0x1]
        %v1643 = vlaneseq
        %v1644 = vshrl.u32 %v1643, 7
        %v1645 = vsub.s32 0, %v1644
        %v1646 = vrot.slane %v1641, %v1645
        %v1648 = vadd.f32 %v1638, %v1646
        %v1649 = vadd.f32 %v1639, %v1646
        %v1650 = vadd.f32 %v1640, %v1646
        %v1651 = vmax.f32 %v1648, 0.0
        %v1652 = vmax.f32 %v1649, 0.0
        %v1653 = vmax.f32 %v1650, 0.0
        %vm1657 = vcmask 1041408
        %v1658 = vrot.slane %v1651, 6
        %v1659 = vrot.slane %v1652, 6
        %v1660 = vsel %vm1657, %v1658, %v1659
        %v1661 = vrot.slane %v1653, 6
        %v1662 = vsel %vm1657, %v1659, %v1661
        %v1666 = vsel %vm1121, %v1658, 0.0
        %v1667 = vsel %vm1122, %v1660, 0.0
        %v1668 = vsel %vm1123, %v1662, 0.0
        %v1669 = vpack.c.bf16 %v1667, %v1666
        %v1670 = vpack.c.bf16 %v1668, %v1668
        %v1672 = vshrl.u32 %v1669, 16
        %v1674 = vshll.u32 %v1669, 16
        %v1676 = vrot.slane %v1674, 1
        %v1677 = vor.u32 %v1672, %v1676
        %v1679 = vshll.u32 %v1670, 16
        %v1681 = vrot.slane %v1679, 1
        %v1682 = vsel %vm555, %v1677, %v1681
        %v1683 = vshrl.u32 %v1670, 16
        %v1685 = vor.u32 %v1683, %v1681
        %v1688 = vrot.slane %v1669, 1
        %v1689 = vrot.slane %v1670, 1
        %v1690 = vsel %vm574, %v1688, %v1689
        %v1691 = vrot.slane %v1672, 1
        %v1692 = vrot.slane %v1674, 2
        %v1693 = vor.u32 %v1691, %v1692
        %v1694 = vrot.slane %v1683, 1
        %v1695 = vrot.slane %v1679, 2
        %v1696 = vor.u32 %v1694, %v1695
        %v1697 = vsel %vm581, %v1693, %v1696
        %v1698 = vrot.slane %v1669, 2
        %v1699 = vrot.slane %v1670, 2
        %v1700 = vsel %vm602, %v1698, %v1699
        %v1701 = vld [vmem:[#allocation9] sm:$0xf]
        %v1702 = vld [vmem:[#allocation9 + $0x4] sm:$0xf]
        %v1703 = vld [vmem:[#allocation9 + $0x8] sm:$0xf]
        %v1704 = vld [vmem:[#allocation9 + $0xc] sm:$0xf]
        %v1705 = vld [vmem:[#allocation9 + $0x10] sm:$0xf]
        %v1706 = vld [vmem:[#allocation9 + $0x14] sm:$0xf]
        %v1707 = vld [vmem:[#allocation9 + $0x18] sm:$0xf]
        %v1708 = vld [vmem:[#allocation9 + $0x1c] sm:$0xf]
        %v1709 = vld [vmem:[#allocation9 + $0x20] sm:$0xf]
        %v1710 = vld [vmem:[#allocation9 + $0x24] sm:$0xf]
        %v1711 = vld [vmem:[#allocation9 + $0x28] sm:$0xf]
        %v1712 = vld [vmem:[#allocation9 + $0x2c] sm:$0xf]
        %v1713 = vld [vmem:[#allocation9 + $0x30] sm:$0xf]
        %v1714 = vld [vmem:[#allocation9 + $0x34] sm:$0xf]
        %v1715 = vld [vmem:[#allocation9 + $0x38] sm:$0xf]
        %v1716 = vld [vmem:[#allocation9 + $0x3c] sm:$0xf]
        %v1717 = vld [vmem:[#allocation9 + $0x40] sm:$0xf]
        %v1718 = vld [vmem:[#allocation9 + $0x44] sm:$0xf]
        %v1719 = vld [vmem:[#allocation9 + $0x48] sm:$0xf]
        %v1720 = vld [vmem:[#allocation9 + $0x4c] sm:$0xf]
        %v1721 = vld [vmem:[#allocation9 + $0x50] sm:$0xf]
        %v1722 = vld [vmem:[#allocation9 + $0x54] sm:$0xf]
        %v1723 = vld [vmem:[#allocation9 + $0x58] sm:$0xf]
        %v1724 = vld [vmem:[#allocation9 + $0x5c] sm:$0xf]
        %v1725 = vld [vmem:[#allocation9 + $0x60] sm:$0xf]
        %v1726 = vld [vmem:[#allocation9 + $0x64] sm:$0xf]
        %v1727 = vld [vmem:[#allocation9 + $0x68] sm:$0xf]
        %v1728 = vld [vmem:[#allocation9 + $0x6c] sm:$0xf]
        %v1729 = vld [vmem:[#allocation9 + $0x70] sm:$0xf]
        %v1730 = vld [vmem:[#allocation9 + $0x74] sm:$0xf]
        %v1731 = vld [vmem:[#allocation9 + $0x78] sm:$0xf]
        %v1732 = vld [vmem:[#allocation9 + $0x7c] sm:$0xf]
        %v1733 = vld [vmem:[#allocation9 + $0x80] sm:$0xf]
        %v1734 = vld [vmem:[#allocation9 + $0x84] sm:$0xf]
        %v1735 = vld [vmem:[#allocation9 + $0x88] sm:$0xf]
        %v1736 = vld [vmem:[#allocation9 + $0x8c] sm:$0xf]
        %v1737 = vld [vmem:[#allocation9 + $0x90] sm:$0xf]
        %v1738 = vld [vmem:[#allocation9 + $0x94] sm:$0xf]
        %v1739 = vld [vmem:[#allocation9 + $0x98] sm:$0xf]
        %v1740 = vld [vmem:[#allocation9 + $0x9c] sm:$0xf]
        %v1741 = vld [vmem:[#allocation9 + $0xa0] sm:$0xf]
        %v1742 = vld [vmem:[#allocation9 + $0xa4] sm:$0xf]
        %v1743 = vld [vmem:[#allocation9 + $0xa8] sm:$0xf]
        %v1744 = vld [vmem:[#allocation9 + $0xac] sm:$0xf]
        %v1745 = vld [vmem:[#allocation9 + $0xb0] sm:$0xf]
        %v1746 = vld [vmem:[#allocation9 + $0xb4] sm:$0xf]
        %v1747 = vld [vmem:[#allocation9 + $0xb8] sm:$0xf]
        %v1748 = vld [vmem:[#allocation9 + $0xbc] sm:$0xf]
        %v1749 = vld [vmem:[#allocation9 + $0xc0] sm:$0xf]
        %v1750 = vld [vmem:[#allocation9 + $0xc4] sm:$0xf]
        %v1751 = vld [vmem:[#allocation9 + $0xc8] sm:$0xf]
        %v1752 = vld [vmem:[#allocation9 + $0xcc] sm:$0xf]
        %v1753 = vld [vmem:[#allocation9 + $0xd0] sm:$0xf]
        %v1754 = vld [vmem:[#allocation9 + $0xd4] sm:$0xf]
        %v1755 = vld [vmem:[#allocation9 + $0xd8] sm:$0xf]
        %v1756 = vld [vmem:[#allocation9 + $0xdc] sm:$0xf]
        %v1757 = vld [vmem:[#allocation9 + $0xe0] sm:$0xf]
        %v1758 = vld [vmem:[#allocation9 + $0xe4] sm:$0xf]
        %v1759 = vld [vmem:[#allocation9 + $0xe8] sm:$0xf]
        %v1760 = vld [vmem:[#allocation9 + $0xec] sm:$0xf]
        %v1761 = vld [vmem:[#allocation9 + $0xf0] sm:$0xf]
        %v1762 = vld [vmem:[#allocation9 + $0xf4] sm:$0xf]
        %v1763 = vld [vmem:[#allocation9 + $0xf8] sm:$0xf]
        %v1764 = vld [vmem:[#allocation9 + $0xfc] sm:$0xf]
        %v1765 = vld [vmem:[#allocation9 + $0x100] sm:$0xf]
        %v1766 = vld [vmem:[#allocation9 + $0x104] sm:$0xf]
        %v1767 = vld [vmem:[#allocation9 + $0x108] sm:$0xf]
        %v1768 = vld [vmem:[#allocation9 + $0x10c] sm:$0xf]
        %v1769 = vld [vmem:[#allocation9 + $0x110] sm:$0xf]
        %v1770 = vld [vmem:[#allocation9 + $0x114] sm:$0xf]
        %v1771 = vld [vmem:[#allocation9 + $0x118] sm:$0xf]
        %v1772 = vld [vmem:[#allocation9 + $0x11c] sm:$0xf]
        %v1773 = vld [vmem:[#allocation9 + $0x120] sm:$0xf]
        %v1774 = vld [vmem:[#allocation9 + $0x124] sm:$0xf]
        %v1775 = vld [vmem:[#allocation9 + $0x128] sm:$0xf]
        %v1776 = vld [vmem:[#allocation9 + $0x12c] sm:$0xf]
        %v1777 = vld [vmem:[#allocation9 + $0x130] sm:$0xf]
        %v1778 = vld [vmem:[#allocation9 + $0x134] sm:$0xf]
        %v1779 = vld [vmem:[#allocation9 + $0x138] sm:$0xf]
        %v1780 = vld [vmem:[#allocation9 + $0x13c] sm:$0xf]
        %v1781 = vrot.slane %v1682, 1
        %v1782 = vrot.slane %v1685, 1
        %v1783 = vsel %vm574, %v1781, %v1782
        %v1784 = vrot.slane %v1690, 1
        %v1785 = vrot.slane %v1689, 1
        %v1786 = vsel %vm574, %v1784, %v1785
        %v1787 = vrot.slane %v1697, 1
        %v1788 = vrot.slane %v1696, 1
        %v1789 = vsel %vm574, %v1787, %v1788
        %v1790 = vrot.slane %v1700, 1
        %v1791 = vrot.slane %v1699, 1
        %v1792 = vsel %vm574, %v1790, %v1791
        %v1878 = vunpack.c.l.b16 %v1701
        %v1879 = vunpack.c.l.b16 %v1702
        %v1880 = vunpack.c.l.b16 %v1703
        %v1881 = vunpack.c.l.b16 %v1704
        %v1882 = vunpack.c.l.b16 %v1705
        %v1883 = vunpack.c.l.b16 %v1706
        %v1884 = vunpack.c.l.b16 %v1707
        %v1885 = vunpack.c.l.b16 %v1708
        %v1886 = vunpack.c.l.b16 %v1709
        %v1887 = vunpack.c.l.b16 %v1710
        %v1888 = vunpack.c.l.b16 %v1711
        %v1889 = vunpack.c.l.b16 %v1712
        %v1890 = vunpack.c.l.b16 %v1713
        %v1891 = vunpack.c.l.b16 %v1714
        %v1892 = vunpack.c.l.b16 %v1715
        %v1893 = vunpack.c.l.b16 %v1716
        %v1894 = vunpack.c.l.b16 %v1717
        %v1895 = vunpack.c.l.b16 %v1718
        %v1896 = vunpack.c.l.b16 %v1719
        %v1897 = vunpack.c.l.b16 %v1720
        %v1898 = vunpack.c.l.b16 %v1721
        %v1899 = vunpack.c.l.b16 %v1722
        %v1900 = vunpack.c.l.b16 %v1723
        %v1901 = vunpack.c.l.b16 %v1724
        %v1902 = vunpack.c.l.b16 %v1725
        %v1903 = vunpack.c.l.b16 %v1726
        %v1904 = vunpack.c.l.b16 %v1727
        %v1905 = vunpack.c.l.b16 %v1728
        %v1906 = vunpack.c.l.b16 %v1729
        %v1907 = vunpack.c.l.b16 %v1730
        %v1908 = vunpack.c.l.b16 %v1731
        %v1909 = vunpack.c.l.b16 %v1732
        %v1910 = vunpack.c.l.b16 %v1733
        %v1911 = vunpack.c.l.b16 %v1734
        %v1912 = vunpack.c.l.b16 %v1735
        %v1913 = vunpack.c.l.b16 %v1736
        %v1914 = vunpack.c.l.b16 %v1737
        %v1915 = vunpack.c.l.b16 %v1738
        %v1916 = vunpack.c.l.b16 %v1739
        %v1917 = vunpack.c.l.b16 %v1740
        %v1918 = vunpack.c.l.b16 %v1741
        %v1919 = vunpack.c.l.b16 %v1742
        %v1920 = vunpack.c.l.b16 %v1743
        %v1921 = vunpack.c.l.b16 %v1744
        %v1922 = vunpack.c.l.b16 %v1745
        %v1923 = vunpack.c.l.b16 %v1746
        %v1924 = vunpack.c.l.b16 %v1747
        %v1925 = vunpack.c.l.b16 %v1748
        %v1926 = vunpack.c.l.b16 %v1749
        %v1927 = vunpack.c.l.b16 %v1750
        %v1928 = vunpack.c.l.b16 %v1751
        %v1929 = vunpack.c.l.b16 %v1752
        %v1930 = vunpack.c.l.b16 %v1753
        %v1931 = vunpack.c.l.b16 %v1754
        %v1932 = vunpack.c.l.b16 %v1755
        %v1933 = vunpack.c.l.b16 %v1756
        %v1934 = vunpack.c.l.b16 %v1757
        %v1935 = vunpack.c.l.b16 %v1758
        %v1936 = vunpack.c.l.b16 %v1759
        %v1937 = vunpack.c.l.b16 %v1760
        %v1938 = vunpack.c.l.b16 %v1761
        %v1939 = vunpack.c.l.b16 %v1762
        %v1940 = vunpack.c.l.b16 %v1763
        %v1941 = vunpack.c.l.b16 %v1764
        %v1942 = vunpack.c.l.b16 %v1765
        %v1943 = vunpack.c.l.b16 %v1766
        %v1944 = vunpack.c.l.b16 %v1767
        %v1945 = vunpack.c.l.b16 %v1768
        %v1946 = vunpack.c.l.b16 %v1769
        %v1947 = vunpack.c.l.b16 %v1770
        %v1948 = vunpack.c.l.b16 %v1771
        %v1949 = vunpack.c.l.b16 %v1772
        %v1950 = vunpack.c.l.b16 %v1773
        %v1951 = vunpack.c.l.b16 %v1774
        %v1952 = vunpack.c.l.b16 %v1775
        %v1953 = vunpack.c.l.b16 %v1776
        %v1954 = vunpack.c.l.b16 %v1777
        %v1955 = vunpack.c.l.b16 %v1778
        %v1956 = vunpack.c.l.b16 %v1779
        %v1957 = vunpack.c.l.b16 %v1780
        %v1958 = vpack.c.b16 %v1879, %v1878
        %v1959 = vpack.c.b16 %v1881, %v1880
        %v1960 = vpack.c.b16 %v1883, %v1882
        %v1961 = vpack.c.b16 %v1885, %v1884
        %v1962 = vpack.c.b16 %v1887, %v1886
        %v1963 = vpack.c.b16 %v1889, %v1888
        %v1964 = vpack.c.b16 %v1891, %v1890
        %v1965 = vpack.c.b16 %v1893, %v1892
        %v1966 = vpack.c.b16 %v1895, %v1894
        %v1967 = vpack.c.b16 %v1897, %v1896
        %v1968 = vpack.c.b16 %v1899, %v1898
        %v1969 = vpack.c.b16 %v1901, %v1900
        %v1970 = vpack.c.b16 %v1903, %v1902
        %v1971 = vpack.c.b16 %v1905, %v1904
        %v1972 = vpack.c.b16 %v1907, %v1906
        %v1973 = vpack.c.b16 %v1909, %v1908
        %v1974 = vpack.c.b16 %v1911, %v1910
        %v1975 = vpack.c.b16 %v1913, %v1912
        %v1976 = vpack.c.b16 %v1915, %v1914
        %v1977 = vpack.c.b16 %v1917, %v1916
        %v1978 = vpack.c.b16 %v1919, %v1918
        %v1979 = vpack.c.b16 %v1921, %v1920
        %v1980 = vpack.c.b16 %v1923, %v1922
        %v1981 = vpack.c.b16 %v1925, %v1924
        %v1982 = vpack.c.b16 %v1927, %v1926
        %v1983 = vpack.c.b16 %v1929, %v1928
        %v1984 = vpack.c.b16 %v1931, %v1930
        %v1985 = vpack.c.b16 %v1933, %v1932
        %v1986 = vpack.c.b16 %v1935, %v1934
        %v1987 = vpack.c.b16 %v1937, %v1936
        %v1988 = vpack.c.b16 %v1939, %v1938
        %v1989 = vpack.c.b16 %v1941, %v1940
        %v1990 = vpack.c.b16 %v1943, %v1942
        %v1991 = vpack.c.b16 %v1945, %v1944
        %v1992 = vpack.c.b16 %v1947, %v1946
        %v1993 = vpack.c.b16 %v1949, %v1948
        %v1994 = vpack.c.b16 %v1951, %v1950
        %v1995 = vpack.c.b16 %v1953, %v1952
        %v1996 = vpack.c.b16 %v1955, %v1954
        %v1997 = vpack.c.b16 %v1957, %v1956
        %2038 = vmatprep.subr.bf16.mxu0 0
        %2039 = vmatpush1.bf16.msra.mxu0 %v1965
        %2040 = vmatprep.subr.bf16.mxu0 0
        %2041 = vmatpush1.bf16.msra.mxu0 %v1964
        %2042 = vmatprep.subr.bf16.mxu0 0
        %2043 = vmatpush1.bf16.msra.mxu0 %v1963
        %2044 = vmatprep.subr.bf16.mxu0 0
        %2045 = vmatpush1.bf16.msra.mxu0 %v1962
        %2046 = vmatprep.subr.bf16.mxu0 0
        %2047 = vmatpush1.bf16.msra.mxu0 %v1961
        %2048 = vmatprep.subr.bf16.mxu0 0
        %2049 = vmatpush1.bf16.msra.mxu0 %v1960
        %2050 = vmatprep.subr.bf16.mxu0 0
        %2051 = vmatpush1.bf16.msra.mxu0 %v1959
        %2052 = vmatprep.subr.bf16.mxu0 0
        %2053 = vmatpush1.bf16.msra.mxu0 %v1958
        %2054 = vmatprep.subr.bf16.mxu0 0
        %2055 = vmatpush2.bf16.msra.mxu0 %v1973
        %2056 = vmatprep.subr.bf16.mxu0 0
        %2057 = vmatpush2.bf16.msra.mxu0 %v1972
        %2058 = vmatprep.subr.bf16.mxu0 0
        %2059 = vmatpush2.bf16.msra.mxu0 %v1971
        %2060 = vmatprep.subr.bf16.mxu0 0
        %2061 = vmatpush2.bf16.msra.mxu0 %v1970
        %2062 = vmatprep.subr.bf16.mxu0 0
        %2063 = vmatpush2.bf16.msra.mxu0 %v1969
        %2064 = vmatprep.subr.bf16.mxu0 0
        %2065 = vmatpush2.bf16.msra.mxu0 %v1968
        %2066 = vmatprep.subr.bf16.mxu0 0
        %2067 = vmatpush2.bf16.msra.mxu0 %v1967
        %2068 = vmatprep.subr.bf16.mxu0 0
        %2069 = vmatpush2.bf16.msra.mxu0 %v1966
        %2070 = vmatprep.mubr.bf16.mxu0 %v1783
        %2071 = vmatmul.mubr.bf16.gmra.mxu0 %v1690
        %v2072 = vpop.f32.mrf.mxu0
        %v2073 = vadd.f32 0.0, %v2072
        %v2074 = vpop.f32.mrf.mxu0
        %v2075 = vpop.f32.mrf.mxu0
        %v2076 = vadd.f32 0.0, %v2075
        %v2077 = vpop.f32.mrf.mxu0
        %2078 = vdwg.mxu0
        %2079 = vmatprep.subr.bf16.mxu0 0
        %2080 = vmatpush1.bf16.msra.mxu0 %v1981
        %2081 = vmatprep.subr.bf16.mxu0 0
        %2082 = vmatpush1.bf16.msra.mxu0 %v1980
        %2083 = vmatprep.subr.bf16.mxu0 0
        %2084 = vmatpush1.bf16.msra.mxu0 %v1979
        %2085 = vmatprep.subr.bf16.mxu0 0
        %2086 = vmatpush1.bf16.msra.mxu0 %v1978
        %2087 = vmatprep.subr.bf16.mxu0 0
        %2088 = vmatpush1.bf16.msra.mxu0 %v1977
        %2089 = vmatprep.subr.bf16.mxu0 0
        %2090 = vmatpush1.bf16.msra.mxu0 %v1976
        %2091 = vmatprep.subr.bf16.mxu0 0
        %2092 = vmatpush1.bf16.msra.mxu0 %v1975
        %2093 = vmatprep.subr.bf16.mxu0 0
        %2094 = vmatpush1.bf16.msra.mxu0 %v1974
        %2095 = vmatprep.subr.bf16.mxu0 0
        %2096 = vmatpush2.bf16.msra.mxu0 %v1989
        %2097 = vmatprep.subr.bf16.mxu0 0
        %2098 = vmatpush2.bf16.msra.mxu0 %v1988
        %2099 = vmatprep.subr.bf16.mxu0 0
        %2100 = vmatpush2.bf16.msra.mxu0 %v1987
        %2101 = vmatprep.subr.bf16.mxu0 0
        %2102 = vmatpush2.bf16.msra.mxu0 %v1986
        %2103 = vmatprep.subr.bf16.mxu0 0
        %2104 = vmatpush2.bf16.msra.mxu0 %v1985
        %2105 = vmatprep.subr.bf16.mxu0 0
        %2106 = vmatpush2.bf16.msra.mxu0 %v1984
        %2107 = vmatprep.subr.bf16.mxu0 0
        %2108 = vmatpush2.bf16.msra.mxu0 %v1983
        %2109 = vmatprep.subr.bf16.mxu0 0
        %2110 = vmatpush2.bf16.msra.mxu0 %v1982
        %2111 = vmatprep.mubr.bf16.mxu0 %v1789
        %2112 = vmatmul.mubr.bf16.gmra.mxu0 %v1786
        %v2113 = vpop.f32.mrf.mxu0
        %v2114 = vadd.f32 %v2073, %v2113
        %v2115 = vpop.f32.mrf.mxu0
        %v2116 = vpop.f32.mrf.mxu0
        %v2117 = vadd.f32 %v2076, %v2116
        %v2118 = vpop.f32.mrf.mxu0
        %2119 = vdwg.mxu0
        %2120 = vmatprep.subr.bf16.mxu0 0
        %2121 = vmatpush1.bf16.msra.mxu0 %v1997
        %2122 = vmatprep.subr.bf16.mxu0 0
        %2123 = vmatpush1.bf16.msra.mxu0 %v1996
        %2124 = vmatprep.subr.bf16.mxu0 0
        %2125 = vmatpush1.bf16.msra.mxu0 %v1995
        %2126 = vmatprep.subr.bf16.mxu0 0
        %2127 = vmatpush1.bf16.msra.mxu0 %v1994
        %2128 = vmatprep.subr.bf16.mxu0 0
        %2129 = vmatpush1.bf16.msra.mxu0 %v1993
        %2130 = vmatprep.subr.bf16.mxu0 0
        %2131 = vmatpush1.bf16.msra.mxu0 %v1992
        %2132 = vmatprep.subr.bf16.mxu0 0
        %2133 = vmatpush1.bf16.msra.mxu0 %v1991
        %2134 = vmatprep.subr.bf16.mxu0 0
        %2135 = vmatpush1.bf16.msra.mxu0 %v1990
        %2136 = vmatprep.subr.bf16.mxu0 0
        %2137 = vmatpush2.bf16.msra.mxu0 0
        %2138 = vmatprep.subr.bf16.mxu0 0
        %2139 = vmatpush2.bf16.msra.mxu0 0
        %2140 = vmatprep.subr.bf16.mxu0 0
        %2141 = vmatpush2.bf16.msra.mxu0 0
        %2142 = vmatprep.subr.bf16.mxu0 0
        %2143 = vmatpush2.bf16.msra.mxu0 0
        %2144 = vmatprep.subr.bf16.mxu0 0
        %2145 = vmatpush2.bf16.msra.mxu0 0
        %2146 = vmatprep.subr.bf16.mxu0 0
        %2147 = vmatpush2.bf16.msra.mxu0 0
        %2148 = vmatprep.subr.bf16.mxu0 0
        %2149 = vmatpush2.bf16.msra.mxu0 0
        %2150 = vmatprep.subr.bf16.mxu0 0
        %2151 = vmatpush2.bf16.msra.mxu0 0
        %2152 = vmatprep.mubr.bf16.mxu0 0
        %2153 = vmatmul.mubr.bf16.gmra.mxu0 %v1792
        %v2154 = vpop.f32.mrf.mxu0
        %v2155 = vadd.f32 %v2114, %v2154
        %v2156 = vpop.f32.mrf.mxu0
        %v2157 = vpop.f32.mrf.mxu0
        %v2158 = vadd.f32 %v2117, %v2157
        %v2159 = vpop.f32.mrf.mxu0
        %2160 = vdwg.mxu0
        %v2161 = vld [vmem:[%s8] sm:$0x1]
        %v2163 = vlaneseq
        %v2164 = vshrl.u32 %v2163, 7
        %v2165 = vsub.s32 0, %v2164
        %v2166 = vrot.slane %v2161, %v2165
        %v2168 = vmul.f32 %v2155, %v2166
        %v2169 = vmul.f32 %v2158, %v2166
        %v2170 = vld [vmem:[%s9] sm:$0x1]
        %v2172 = vlaneseq
        %v2173 = vshrl.u32 %v2172, 7
        %v2174 = vsub.s32 0, %v2173
        %v2175 = vrot.slane %v2170, %v2174
        %v2177 = vadd.f32 %v2168, %v2175
        %v2178 = vadd.f32 %v2169, %v2175
        %v2179 = vmax.f32 %v2177, 0.0
        %v2180 = vmax.f32 %v2178, 0.0
        %v2181 = vpack.c.bf16 %v2180, %v2179
        %v2182 = vld [vmem:[#allocation10] sm:$0xf]
        %v2183 = vld [vmem:[#allocation10 + $0x4] sm:$0xf]
        %v2184 = vld [vmem:[#allocation10 + $0x8] sm:$0xf]
        %v2185 = vld [vmem:[#allocation10 + $0xc] sm:$0xf]
        %v2186 = vld [vmem:[#allocation10 + $0x10] sm:$0xf]
        %v2187 = vld [vmem:[#allocation10 + $0x14] sm:$0xf]
        %v2188 = vld [vmem:[#allocation10 + $0x18] sm:$0xf]
        %v2189 = vld [vmem:[#allocation10 + $0x1c] sm:$0xf]
        %v2190 = vld [vmem:[#allocation10 + $0x20] sm:$0xf]
        %v2191 = vld [vmem:[#allocation10 + $0x24] sm:$0xf]
        %v2192 = vld [vmem:[#allocation10 + $0x28] sm:$0xf]
        %v2193 = vld [vmem:[#allocation10 + $0x2c] sm:$0xf]
        %v2194 = vld [vmem:[#allocation10 + $0x30] sm:$0xf]
        %v2195 = vld [vmem:[#allocation10 + $0x34] sm:$0xf]
        %v2196 = vld [vmem:[#allocation10 + $0x38] sm:$0xf]
        %v2197 = vld [vmem:[#allocation10 + $0x3c] sm:$0xf]
        %v2198 = vld [vmem:[%s11] sm:$0x1]
        %v2200 = vlaneseq
        %v2201 = vshrl.u32 %v2200, 7
        %v2202 = vsub.s32 0, %v2201
        %v2203 = vrot.slane %v2198, %v2202
        %v2221 = vunpack.c.l.b16 %v2182
        %v2222 = vunpack.c.l.b16 %v2183
        %v2223 = vunpack.c.l.b16 %v2184
        %v2224 = vunpack.c.l.b16 %v2185
        %v2225 = vunpack.c.l.b16 %v2186
        %v2226 = vunpack.c.l.b16 %v2187
        %v2227 = vunpack.c.l.b16 %v2188
        %v2228 = vunpack.c.l.b16 %v2189
        %v2229 = vunpack.c.l.b16 %v2190
        %v2230 = vunpack.c.l.b16 %v2191
        %v2231 = vunpack.c.l.b16 %v2192
        %v2232 = vunpack.c.l.b16 %v2193
        %v2233 = vunpack.c.l.b16 %v2194
        %v2234 = vunpack.c.l.b16 %v2195
        %v2235 = vunpack.c.l.b16 %v2196
        %v2236 = vunpack.c.l.b16 %v2197
        %v2237 = vpack.c.b16 %v2222, %v2221
        %v2238 = vpack.c.b16 %v2224, %v2223
        %v2239 = vpack.c.b16 %v2226, %v2225
        %v2240 = vpack.c.b16 %v2228, %v2227
        %v2241 = vpack.c.b16 %v2230, %v2229
        %v2242 = vpack.c.b16 %v2232, %v2231
        %v2243 = vpack.c.b16 %v2234, %v2233
        %v2244 = vpack.c.b16 %v2236, %v2235
        %2253 = vmatprep.subr.bf16.mxu0 0
        %2254 = vmatpush1.bf16.msra.mxu0 %v2244
        %2255 = vmatprep.subr.bf16.mxu0 0
        %2256 = vmatpush1.bf16.msra.mxu0 %v2243
        %2257 = vmatprep.subr.bf16.mxu0 0
        %2258 = vmatpush1.bf16.msra.mxu0 %v2242
        %2259 = vmatprep.subr.bf16.mxu0 0
        %2260 = vmatpush1.bf16.msra.mxu0 %v2241
        %2261 = vmatprep.subr.bf16.mxu0 0
        %2262 = vmatpush1.bf16.msra.mxu0 %v2240
        %2263 = vmatprep.subr.bf16.mxu0 0
        %2264 = vmatpush1.bf16.msra.mxu0 %v2239
        %2265 = vmatprep.subr.bf16.mxu0 0
        %2266 = vmatpush1.bf16.msra.mxu0 %v2238
        %2267 = vmatprep.subr.bf16.mxu0 0
        %2268 = vmatpush1.bf16.msra.mxu0 %v2237
        %2269 = vmatprep.subr.bf16.mxu0 0
        %2270 = vmatpush2.bf16.msra.mxu0 0
        %2271 = vmatprep.subr.bf16.mxu0 0
        %2272 = vmatpush2.bf16.msra.mxu0 0
        %2273 = vmatprep.subr.bf16.mxu0 0
        %2274 = vmatpush2.bf16.msra.mxu0 0
        %2275 = vmatprep.subr.bf16.mxu0 0
        %2276 = vmatpush2.bf16.msra.mxu0 0
        %2277 = vmatprep.subr.bf16.mxu0 0
        %2278 = vmatpush2.bf16.msra.mxu0 0
        %2279 = vmatprep.subr.bf16.mxu0 0
        %2280 = vmatpush2.bf16.msra.mxu0 0
        %2281 = vmatprep.subr.bf16.mxu0 0
        %2282 = vmatpush2.bf16.msra.mxu0 0
        %2283 = vmatprep.subr.bf16.mxu0 0
        %2284 = vmatpush2.bf16.msra.mxu0 0
        %2285 = vmatprep.mubr.bf16.mxu0 0
        %2286 = vmatmul.mubr.bf16.gmra.mxu0 %v2181
        %v2287 = vpop.f32.mrf.mxu0
        %v2288 = vadd.f32 %v2203, %v2287
        %v2289 = vpop.f32.mrf.mxu0
        %v2290 = vpop.f32.mrf.mxu0
        %v2291 = vadd.f32 %v2203, %v2290
        %v2292 = vpop.f32.mrf.mxu0
        %2293 = vdwg.mxu0
        %v2294 = vmax.f32 %v2288, 0.0
        %v2295 = vmax.f32 %v2291, 0.0
        %2296 = vst [vmem:[%s438] sm:$0xff] %v2294
        %2297 = vst [vmem:[%s438 + $0x8] sm:$0xff] %v2295
        %s2298 = sand.u32 %s282, 1
        %s2299 = scalar_lea.sflag [#allocation6], %s2298
        %s2300 = sand.u32 %s282, 1
        %s2301 = smul.addr %s2300, 16
        %s2302 = scalar_lea.vmem [#allocation12], %s2301
        // Predicated region
        $region97: #{tpu_custom_call.1} parent=63 // pred_check
          %p2303 = pneg %p292
        $region98: #{tpu_custom_call.1} parent=63 // pred_check_branch
          %2305 = sbr.rel (%p2303) target = $region100
        $region99: #{tpu_custom_call.1} parent=63 // pred_region
          %s2306 = smul.u32 2, %s34
          %s2308 = ssub.s32 256, 256
          %2309 = vsyncadd %s2299, %s2308
          %s2310 = smul.addr %s33, 2
          %s2311 = sadd.s32 %s2306, %s2310
          %s2312 = smul.addr %s2311, 128
          %s2313 = scalar_lea.hbm %s12, %s2312
          %s2314 = sshll.u32 %s2302, 4
          %s2315 = int_to_ptr.vmem [resolvable:$true] %s2314
          %2320 = dma.vmem_to_hbm [thread:$0]  %s2315, 256, %s2313, %s2299, 128, 128, 8
        $region100: #{tpu_custom_call.1} parent=63 // pred_fallthru
          _
      $region64: #{tpu_custom_call.1} parent=5 // pred_fallthru
        _
      %p2321 = scmp.le.s32.totalorder 2, %s24
      // Predicated region
      $region101: #{tpu_custom_call.1} parent=5 // pred_check
        %p2322 = pneg %p2321
      $region102: #{tpu_custom_call.1} parent=5 // pred_check_branch
        %2324 = sbr.rel (%p2322) target = $region104
      $region103: #{tpu_custom_call.1} parent=5 // pred_region
        %s2325 = ssub.s32 %s24, 2
        // Predicated region
        $region105: #{tpu_custom_call.1} parent=103 // pred_check
          %p2326 = pneg %p298
        $region106: #{tpu_custom_call.1} parent=103 // pred_check_branch
          %2328 = sbr.rel (%p2326) target = $region108
        $region107: #{tpu_custom_call.1} parent=103 // pred_region
          %s2329 = sand.u32 %s283, 1
          %s2330 = scalar_lea.sflag [#allocation6], %s2329
          %s2331 = sand.u32 %s283, 1
          %s2332 = smul.addr %s2331, 16
          %s2333 = scalar_lea.vmem [#allocation12], %s2332
          %2334 = dma.done %s2330, 256
        $region108: #{tpu_custom_call.1} parent=103 // pred_fallthru
          _
      $region104: #{tpu_custom_call.1} parent=5 // pred_fallthru
        _
    $region6: #{tpu_custom_call.1} parent=1 // loop_footer
      %s28 = sadd.s32 1, %s24
    $region7: #{tpu_custom_call.1} parent=1 // loop_footer_branch
      %23 = sbr.rel target = $region3
    $region8: #{tpu_custom_call.1} parent=1 // loop_exit
      _
    %2335 = vsyncpa [#allocation5], 1
    %s2336 = scalar_lea.sflag [#allocation5], 1
    %2337 = vsyncpa %s2336, 1
    %2338 = vsyncpa [#allocation8], 1
    %2339 = vsyncpa [#allocation11], 1
    %2340 = vsyncpa [#allocation6], 1
    %s2341 = scalar_lea.sflag [#allocation6], 1
    %2342 = vsyncpa %s2341, 1
  %2343 = vsyncmov [#allocation3]
  %s2344 = vpop.sfrf %2343
  %p2345 = scmp.eq.s32.totalorder %s2344, 0
  %p2346 = pneg %p2345
  %2348 = shalt.err (%p2346)
  %s2349 = scalar_lea.sflag [#allocation3], 1
  %2350 = vsyncmov %s2349
  %s2351 = vpop.sfrf %2350
  %p2352 = scmp.eq.s32.totalorder %s2351, 0
  %p2353 = pneg %p2352
  %2355 = shalt.err (%p2353)

</llo_original>
